<compile_context>
chip_gen: v7x
topology: tpu7x:2x2x1
jax: 0.10.0
libtpu: 0.0.40
codegen_flags: <defaults>
</compile_context>

<pallas_src>
import jax
import jax.numpy as jnp
from jax.experimental import pallas as pl
from jax.experimental.pallas import tpu as pltpu


# ---------------------------------------------------------------------------
# Pallas kernel: per-frame  W(Cout,C) @ x(C, HW) + bias, ReLU   (backbone hot path)
# ---------------------------------------------------------------------------
def _pointwise_conv_relu_kernel(x_ref, w_ref, b_ref, o_ref):
    """x_ref: (NB, C, HW), w_ref: (Cout, C), b_ref: (Cout, 1), o_ref: (NB, Cout, HW)."""
    w = w_ref[...]                            # (Cout, C)  tiny, VMEM-resident
    b = b_ref[...]                            # (Cout, 1)
    nb, c_in, _ = x_ref.shape
    for n in range(nb):                       # static unroll over frames in the block
        xn = x_ref[n]                         # (C, HW) lane-dense load
        # Channel contraction as C VPU FMAs: (1,HW) * (Cout,1) -> (Cout,HW)
        acc = xn[0:1, :] * w[:, 0:1]
        for c in range(1, c_in):
            acc = acc + xn[c:c + 1, :] * w[:, c:c + 1]
        o_ref[n] = jnp.maximum(acc + b, 0.0).astype(o_ref.dtype)


def _backbone_pallas(x3, w, b2):
    """x3: (N, C, HW) f32, w: (Cout, C) f32, b2: (Cout, 1) f32 -> (N, Cout, HW) f32."""
    N, C, HW = x3.shape
    Cout = w.shape[0]

    # 2 parallel grid steps -> sharded across v7x's two TensorCores; on v5e/v6e
    # the extra step costs only ~0.35us.  Fall back to 1 step if N is odd.
    n_steps = 2 if (N % 2 == 0 and N >= 2) else 1
    # TODO(synk): ragged last tile for N not divisible by n_steps (not needed here).
    nb = N // n_steps

    return pl.pallas_call(
        _pointwise_conv_relu_kernel,
        out_shape=jax.ShapeDtypeStruct((N, Cout, HW), jnp.float32),
        grid_spec=pltpu.PrefetchScalarGridSpec(
            num_scalar_prefetch=0,
            grid=(n_steps,),
            in_specs=[
                pl.BlockSpec((nb, C, HW), lambda i: (i, 0, 0)),   # lane dim = HW
                pl.BlockSpec((Cout, C), lambda i: (0, 0)),        # full weight
                pl.BlockSpec((Cout, 1), lambda i: (0, 0)),        # bias column
            ],
            out_specs=pl.BlockSpec((nb, Cout, HW), lambda i: (i, 0, 0)),
        ),
        compiler_params=pltpu.CompilerParams(
            dimension_semantics=("parallel",),
        ),
    )(x3, w, b2)


# ---------------------------------------------------------------------------
# TensorFolder.flatten / fold (pure reshape glue)
# ---------------------------------------------------------------------------
def tensor_flatten(x):
    # (B, T, ...) -> (B*T, ...)
    return x.reshape((x.shape[0] * x.shape[1],) + x.shape[2:])


def tensor_fold(x, n):
    # (B*n, ...) -> (B, n, ...)
    return x.reshape((x.shape[0] // n, n) + x.shape[1:])


# ---------------------------------------------------------------------------
# SequenceConverter.forward equivalent
# ---------------------------------------------------------------------------
def sequence_converter_forward(params, *args):
    """args: one or more sequence tensors of shape (B, T, C, H, W)."""
    assert len(args) > 0
    observations_count = args[0].shape[1]
    for sequences in args:
        assert sequences.shape[1] == observations_count, (
            "Incompatible observations count"
        )

    # Flatten every sequence input (backbone here consumes only the first).
    xs = [tensor_flatten(sequences) for sequences in args]
    x = xs[0]                                    # (N, C, H, W), N = B*T

    N, C, H, W = x.shape
    w, b = params["w"], params["b"]              # w: (Cout, C), b: (Cout,)
    Cout = w.shape[0]

    # NCHW is already (N, C, H*W)-contiguous: pure reshape in, pure reshape out.
    x3 = x.reshape(N, C, H * W)
    y3 = _backbone_pallas(x3, w, b.reshape(Cout, 1))   # (N, Cout, HW) Pallas hot path
    y = y3.reshape(N, Cout, H, W)

    # SequenceConverter.convert: fold back to (B, T, Cout, H, W).
    # TODO(synk): dict / list / dim<=1 backbone outputs are pure Python dispatch
    #             in the original; only the tensor branch is exercised here.
    return tensor_fold(y, observations_count)


if __name__ == "__main__":
    # Small shapes consistent with the forward: (B, T, C, H, W)
    B, T, C, H, W = 2, 8, 4, 16, 16
    C_OUT = 32

    key = jax.random.PRNGKey(0)
    k_x, k_w, k_b = jax.random.split(key, 3)

    x = jax.random.normal(k_x, (B, T, C, H, W), dtype=jnp.float32)

    # Deterministic backbone parameters (Conv2d(C, C_OUT, kernel_size=1) + ReLU).
    # Weight stored PyTorch-style (out_channels, in_channels).
    params = {
        "w": jax.random.normal(k_w, (C_OUT, C), dtype=jnp.float32) * 0.1,
        "b": jax.random.normal(k_b, (C_OUT,), dtype=jnp.float32) * 0.1,
    }

    fwd = jax.jit(sequence_converter_forward)
    out = fwd(params, x)
    out = jax.block_until_ready(out)

    assert out.shape == (B, T, C_OUT, H, W), out.shape
    assert out.dtype == jnp.float32

    # Sanity check against a pure-JAX reference of the same computation.
    x_nchw = x.reshape(B * T, C, H, W)
    ref = jnp.einsum("oc,nchw->nohw", params["w"], x_nchw,
                     preferred_element_type=jnp.float32)
    ref = jnp.maximum(ref + params["b"].reshape(1, C_OUT, 1, 1), 0.0)
    ref = ref.reshape(B, T, C_OUT, H, W)
    assert jnp.allclose(out, ref, atol=1e-5, rtol=1e-5)

    print("KERNEL_OK")
</pallas_src>

<mosaic_0001>
module attributes {stable_mosaic.version = 11 : i64} {
  func.func @_pointwise_conv_relu_kernel(%arg0: i32, %arg1: memref<8x4x256xf32, #tpu.memory_space<vmem>>, %arg2: memref<32x4xf32, #tpu.memory_space<vmem>>, %arg3: memref<32x1xf32, #tpu.memory_space<vmem>>, %arg4: memref<8x32x256xf32, #tpu.memory_space<vmem>>) attributes {dimension_semantics = [#tpu.dimension_semantics<parallel>], iteration_bounds = array<i64: 2>, scalar_prefetch = 0 : i64, scratch_operands = 0 : i64, tpu.core_type = #tpu.core_type<tc>, window_params = [{transform_indices = @transform_0, window_bounds = array<i64: 8, 4, 256>}, {pipeline_mode = #tpu.pipeline_mode<synchronous>, transform_indices = @transform_1, window_bounds = array<i64: 32, 4>}, {pipeline_mode = #tpu.pipeline_mode<synchronous>, transform_indices = @transform_2, window_bounds = array<i64: 32, 1>}, {transform_indices = @transform_3, window_bounds = array<i64: 8, 32, 256>}]} {
    %c0 = arith.constant 0 : index
    %c0_0 = arith.constant 0 : index
    %0 = vector.load %arg2[%c0, %c0_0] : memref<32x4xf32, #tpu.memory_space<vmem>>, vector<32x4xf32>
    %c0_1 = arith.constant 0 : index
    %c0_2 = arith.constant 0 : index
    %1 = vector.load %arg3[%c0_1, %c0_2] : memref<32x1xf32, #tpu.memory_space<vmem>>, vector<32x1xf32>
    %c0_3 = arith.constant 0 : index
    %c0_4 = arith.constant 0 : index
    %c0_5 = arith.constant 0 : index
    %2 = vector.load %arg1[%c0_3, %c0_4, %c0_5] : memref<8x4x256xf32, #tpu.memory_space<vmem>>, vector<1x4x256xf32>
    %3 = vector.shape_cast %2 : vector<1x4x256xf32> to vector<4x256xf32>
    %4 = vector.extract_strided_slice %3 {offsets = [0, 0], sizes = [1, 256], strides = [1, 1]} : vector<4x256xf32> to vector<1x256xf32>
    %5 = vector.extract_strided_slice %0 {offsets = [0, 0], sizes = [32, 1], strides = [1, 1]} : vector<32x4xf32> to vector<32x1xf32>
    %6 = vector.broadcast %4 : vector<1x256xf32> to vector<32x256xf32>
    %7 = vector.broadcast %5 : vector<32x1xf32> to vector<32x256xf32>
    %8 = arith.mulf %6, %7 : vector<32x256xf32>
    %9 = vector.extract_strided_slice %3 {offsets = [1, 0], sizes = [1, 256], strides = [1, 1]} : vector<4x256xf32> to vector<1x256xf32>
    %10 = vector.extract_strided_slice %0 {offsets = [0, 1], sizes = [32, 1], strides = [1, 1]} : vector<32x4xf32> to vector<32x1xf32>
    %11 = vector.broadcast %9 : vector<1x256xf32> to vector<32x256xf32>
    %12 = vector.broadcast %10 : vector<32x1xf32> to vector<32x256xf32>
    %13 = arith.mulf %11, %12 : vector<32x256xf32>
    %14 = arith.addf %8, %13 : vector<32x256xf32>
    %15 = vector.extract_strided_slice %3 {offsets = [2, 0], sizes = [1, 256], strides = [1, 1]} : vector<4x256xf32> to vector<1x256xf32>
    %16 = vector.extract_strided_slice %0 {offsets = [0, 2], sizes = [32, 1], strides = [1, 1]} : vector<32x4xf32> to vector<32x1xf32>
    %17 = vector.broadcast %15 : vector<1x256xf32> to vector<32x256xf32>
    %18 = vector.broadcast %16 : vector<32x1xf32> to vector<32x256xf32>
    %19 = arith.mulf %17, %18 : vector<32x256xf32>
    %20 = arith.addf %14, %19 : vector<32x256xf32>
    %21 = vector.extract_strided_slice %3 {offsets = [3, 0], sizes = [1, 256], strides = [1, 1]} : vector<4x256xf32> to vector<1x256xf32>
    %22 = vector.extract_strided_slice %0 {offsets = [0, 3], sizes = [32, 1], strides = [1, 1]} : vector<32x4xf32> to vector<32x1xf32>
    %23 = vector.broadcast %21 : vector<1x256xf32> to vector<32x256xf32>
    %24 = vector.broadcast %22 : vector<32x1xf32> to vector<32x256xf32>
    %25 = arith.mulf %23, %24 : vector<32x256xf32>
    %26 = arith.addf %20, %25 : vector<32x256xf32>
    %27 = vector.broadcast %1 : vector<32x1xf32> to vector<32x256xf32>
    %28 = arith.addf %26, %27 : vector<32x256xf32>
    %cst = arith.constant 0.000000e+00 : f32
    %29 = vector.broadcast %cst : f32 to vector<32x256xf32>
    %30 = arith.maximumf %28, %29 : vector<32x256xf32>
    %c0_6 = arith.constant 0 : index
    %c0_7 = arith.constant 0 : index
    %c0_8 = arith.constant 0 : index
    %31 = vector.load %arg4[%c0_6, %c0_7, %c0_8] : memref<8x32x256xf32, #tpu.memory_space<vmem>>, vector<1x32x256xf32>
    %32 = vector.shape_cast %31 : vector<1x32x256xf32> to vector<32x256xf32>
    %33 = vector.shape_cast %30 : vector<32x256xf32> to vector<1x32x256xf32>
    tpu.vector_store %arg4[%c0_6, %c0_7, %c0_8], %33 {strides = array<i32>} : memref<8x32x256xf32, #tpu.memory_space<vmem>>, vector<1x32x256xf32>,
    %c1 = arith.constant 1 : index
    %c0_9 = arith.constant 0 : index
    %c0_10 = arith.constant 0 : index
    %34 = vector.load %arg1[%c1, %c0_9, %c0_10] : memref<8x4x256xf32, #tpu.memory_space<vmem>>, vector<1x4x256xf32>
    %35 = vector.shape_cast %34 : vector<1x4x256xf32> to vector<4x256xf32>
    %36 = vector.extract_strided_slice %35 {offsets = [0, 0], sizes = [1, 256], strides = [1, 1]} : vector<4x256xf32> to vector<1x256xf32>
    %37 = vector.extract_strided_slice %0 {offsets = [0, 0], sizes = [32, 1], strides = [1, 1]} : vector<32x4xf32> to vector<32x1xf32>
    %38 = vector.broadcast %36 : vector<1x256xf32> to vector<32x256xf32>
    %39 = vector.broadcast %37 : vector<32x1xf32> to vector<32x256xf32>
    %40 = arith.mulf %38, %39 : vector<32x256xf32>
    %41 = vector.extract_strided_slice %35 {offsets = [1, 0], sizes = [1, 256], strides = [1, 1]} : vector<4x256xf32> to vector<1x256xf32>
    %42 = vector.extract_strided_slice %0 {offsets = [0, 1], sizes = [32, 1], strides = [1, 1]} : vector<32x4xf32> to vector<32x1xf32>
    %43 = vector.broadcast %41 : vector<1x256xf32> to vector<32x256xf32>
    %44 = vector.broadcast %42 : vector<32x1xf32> to vector<32x256xf32>
    %45 = arith.mulf %43, %44 : vector<32x256xf32>
    %46 = arith.addf %40, %45 : vector<32x256xf32>
    %47 = vector.extract_strided_slice %35 {offsets = [2, 0], sizes = [1, 256], strides = [1, 1]} : vector<4x256xf32> to vector<1x256xf32>
    %48 = vector.extract_strided_slice %0 {offsets = [0, 2], sizes = [32, 1], strides = [1, 1]} : vector<32x4xf32> to vector<32x1xf32>
    %49 = vector.broadcast %47 : vector<1x256xf32> to vector<32x256xf32>
    %50 = vector.broadcast %48 : vector<32x1xf32> to vector<32x256xf32>
    %51 = arith.mulf %49, %50 : vector<32x256xf32>
    %52 = arith.addf %46, %51 : vector<32x256xf32>
    %53 = vector.extract_strided_slice %35 {offsets = [3, 0], sizes = [1, 256], strides = [1, 1]} : vector<4x256xf32> to vector<1x256xf32>
    %54 = vector.extract_strided_slice %0 {offsets = [0, 3], sizes = [32, 1], strides = [1, 1]} : vector<32x4xf32> to vector<32x1xf32>
    %55 = vector.broadcast %53 : vector<1x256xf32> to vector<32x256xf32>
    %56 = vector.broadcast %54 : vector<32x1xf32> to vector<32x256xf32>
    %57 = arith.mulf %55, %56 : vector<32x256xf32>
    %58 = arith.addf %52, %57 : vector<32x256xf32>
    %59 = vector.broadcast %1 : vector<32x1xf32> to vector<32x256xf32>
    %60 = arith.addf %58, %59 : vector<32x256xf32>
    %cst_11 = arith.constant 0.000000e+00 : f32
    %61 = vector.broadcast %cst_11 : f32 to vector<32x256xf32>
    %62 = arith.maximumf %60, %61 : vector<32x256xf32>
    %c1_12 = arith.constant 1 : index
    %c0_13 = arith.constant 0 : index
    %c0_14 = arith.constant 0 : index
    %63 = vector.load %arg4[%c1_12, %c0_13, %c0_14] : memref<8x32x256xf32, #tpu.memory_space<vmem>>, vector<1x32x256xf32>
    %64 = vector.shape_cast %63 : vector<1x32x256xf32> to vector<32x256xf32>
    %65 = vector.shape_cast %62 : vector<32x256xf32> to vector<1x32x256xf32>
    tpu.vector_store %arg4[%c1_12, %c0_13, %c0_14], %65 {strides = array<i32>} : memref<8x32x256xf32, #tpu.memory_space<vmem>>, vector<1x32x256xf32>,
    %c2 = arith.constant 2 : index
    %c0_15 = arith.constant 0 : index
    %c0_16 = arith.constant 0 : index
    %66 = vector.load %arg1[%c2, %c0_15, %c0_16] : memref<8x4x256xf32, #tpu.memory_space<vmem>>, vector<1x4x256xf32>
    %67 = vector.shape_cast %66 : vector<1x4x256xf32> to vector<4x256xf32>
    %68 = vector.extract_strided_slice %67 {offsets = [0, 0], sizes = [1, 256], strides = [1, 1]} : vector<4x256xf32> to vector<1x256xf32>
    %69 = vector.extract_strided_slice %0 {offsets = [0, 0], sizes = [32, 1], strides = [1, 1]} : vector<32x4xf32> to vector<32x1xf32>
    %70 = vector.broadcast %68 : vector<1x256xf32> to vector<32x256xf32>
    %71 = vector.broadcast %69 : vector<32x1xf32> to vector<32x256xf32>
    %72 = arith.mulf %70, %71 : vector<32x256xf32>
    %73 = vector.extract_strided_slice %67 {offsets = [1, 0], sizes = [1, 256], strides = [1, 1]} : vector<4x256xf32> to vector<1x256xf32>
    %74 = vector.extract_strided_slice %0 {offsets = [0, 1], sizes = [32, 1], strides = [1, 1]} : vector<32x4xf32> to vector<32x1xf32>
    %75 = vector.broadcast %73 : vector<1x256xf32> to vector<32x256xf32>
    %76 = vector.broadcast %74 : vector<32x1xf32> to vector<32x256xf32>
    %77 = arith.mulf %75, %76 : vector<32x256xf32>
    %78 = arith.addf %72, %77 : vector<32x256xf32>
    %79 = vector.extract_strided_slice %67 {offsets = [2, 0], sizes = [1, 256], strides = [1, 1]} : vector<4x256xf32> to vector<1x256xf32>
    %80 = vector.extract_strided_slice %0 {offsets = [0, 2], sizes = [32, 1], strides = [1, 1]} : vector<32x4xf32> to vector<32x1xf32>
    %81 = vector.broadcast %79 : vector<1x256xf32> to vector<32x256xf32>
    %82 = vector.broadcast %80 : vector<32x1xf32> to vector<32x256xf32>
    %83 = arith.mulf %81, %82 : vector<32x256xf32>
    %84 = arith.addf %78, %83 : vector<32x256xf32>
    %85 = vector.extract_strided_slice %67 {offsets = [3, 0], sizes = [1, 256], strides = [1, 1]} : vector<4x256xf32> to vector<1x256xf32>
    %86 = vector.extract_strided_slice %0 {offsets = [0, 3], sizes = [32, 1], strides = [1, 1]} : vector<32x4xf32> to vector<32x1xf32>
    %87 = vector.broadcast %85 : vector<1x256xf32> to vector<32x256xf32>
    %88 = vector.broadcast %86 : vector<32x1xf32> to vector<32x256xf32>
    %89 = arith.mulf %87, %88 : vector<32x256xf32>
    %90 = arith.addf %84, %89 : vector<32x256xf32>
    %91 = vector.broadcast %1 : vector<32x1xf32> to vector<32x256xf32>
    %92 = arith.addf %90, %91 : vector<32x256xf32>
    %cst_17 = arith.constant 0.000000e+00 : f32
    %93 = vector.broadcast %cst_17 : f32 to vector<32x256xf32>
    %94 = arith.maximumf %92, %93 : vector<32x256xf32>
    %c2_18 = arith.constant 2 : index
    %c0_19 = arith.constant 0 : index
    %c0_20 = arith.constant 0 : index
    %95 = vector.load %arg4[%c2_18, %c0_19, %c0_20] : memref<8x32x256xf32, #tpu.memory_space<vmem>>, vector<1x32x256xf32>
    %96 = vector.shape_cast %95 : vector<1x32x256xf32> to vector<32x256xf32>
    %97 = vector.shape_cast %94 : vector<32x256xf32> to vector<1x32x256xf32>
    tpu.vector_store %arg4[%c2_18, %c0_19, %c0_20], %97 {strides = array<i32>} : memref<8x32x256xf32, #tpu.memory_space<vmem>>, vector<1x32x256xf32>,
    %c3 = arith.constant 3 : index
    %c0_21 = arith.constant 0 : index
    %c0_22 = arith.constant 0 : index
    %98 = vector.load %arg1[%c3, %c0_21, %c0_22] : memref<8x4x256xf32, #tpu.memory_space<vmem>>, vector<1x4x256xf32>
    %99 = vector.shape_cast %98 : vector<1x4x256xf32> to vector<4x256xf32>
    %100 = vector.extract_strided_slice %99 {offsets = [0, 0], sizes = [1, 256], strides = [1, 1]} : vector<4x256xf32> to vector<1x256xf32>
    %101 = vector.extract_strided_slice %0 {offsets = [0, 0], sizes = [32, 1], strides = [1, 1]} : vector<32x4xf32> to vector<32x1xf32>
    %102 = vector.broadcast %100 : vector<1x256xf32> to vector<32x256xf32>
    %103 = vector.broadcast %101 : vector<32x1xf32> to vector<32x256xf32>
    %104 = arith.mulf %102, %103 : vector<32x256xf32>
    %105 = vector.extract_strided_slice %99 {offsets = [1, 0], sizes = [1, 256], strides = [1, 1]} : vector<4x256xf32> to vector<1x256xf32>
    %106 = vector.extract_strided_slice %0 {offsets = [0, 1], sizes = [32, 1], strides = [1, 1]} : vector<32x4xf32> to vector<32x1xf32>
    %107 = vector.broadcast %105 : vector<1x256xf32> to vector<32x256xf32>
    %108 = vector.broadcast %106 : vector<32x1xf32> to vector<32x256xf32>
    %109 = arith.mulf %107, %108 : vector<32x256xf32>
    %110 = arith.addf %104, %109 : vector<32x256xf32>
    %111 = vector.extract_strided_slice %99 {offsets = [2, 0], sizes = [1, 256], strides = [1, 1]} : vector<4x256xf32> to vector<1x256xf32>
    %112 = vector.extract_strided_slice %0 {offsets = [0, 2], sizes = [32, 1], strides = [1, 1]} : vector<32x4xf32> to vector<32x1xf32>
    %113 = vector.broadcast %111 : vector<1x256xf32> to vector<32x256xf32>
    %114 = vector.broadcast %112 : vector<32x1xf32> to vector<32x256xf32>
    %115 = arith.mulf %113, %114 : vector<32x256xf32>
    %116 = arith.addf %110, %115 : vector<32x256xf32>
    %117 = vector.extract_strided_slice %99 {offsets = [3, 0], sizes = [1, 256], strides = [1, 1]} : vector<4x256xf32> to vector<1x256xf32>
    %118 = vector.extract_strided_slice %0 {offsets = [0, 3], sizes = [32, 1], strides = [1, 1]} : vector<32x4xf32> to vector<32x1xf32>
    %119 = vector.broadcast %117 : vector<1x256xf32> to vector<32x256xf32>
    %120 = vector.broadcast %118 : vector<32x1xf32> to vector<32x256xf32>
    %121 = arith.mulf %119, %120 : vector<32x256xf32>
    %122 = arith.addf %116, %121 : vector<32x256xf32>
    %123 = vector.broadcast %1 : vector<32x1xf32> to vector<32x256xf32>
    %124 = arith.addf %122, %123 : vector<32x256xf32>
    %cst_23 = arith.constant 0.000000e+00 : f32
    %125 = vector.broadcast %cst_23 : f32 to vector<32x256xf32>
    %126 = arith.maximumf %124, %125 : vector<32x256xf32>
    %c3_24 = arith.constant 3 : index
    %c0_25 = arith.constant 0 : index
    %c0_26 = arith.constant 0 : index
    %127 = vector.load %arg4[%c3_24, %c0_25, %c0_26] : memref<8x32x256xf32, #tpu.memory_space<vmem>>, vector<1x32x256xf32>
    %128 = vector.shape_cast %127 : vector<1x32x256xf32> to vector<32x256xf32>
    %129 = vector.shape_cast %126 : vector<32x256xf32> to vector<1x32x256xf32>
    tpu.vector_store %arg4[%c3_24, %c0_25, %c0_26], %129 {strides = array<i32>} : memref<8x32x256xf32, #tpu.memory_space<vmem>>, vector<1x32x256xf32>,
    %c4 = arith.constant 4 : index
    %c0_27 = arith.constant 0 : index
    %c0_28 = arith.constant 0 : index
    %130 = vector.load %arg1[%c4, %c0_27, %c0_28] : memref<8x4x256xf32, #tpu.memory_space<vmem>>, vector<1x4x256xf32>
    %131 = vector.shape_cast %130 : vector<1x4x256xf32> to vector<4x256xf32>
    %132 = vector.extract_strided_slice %131 {offsets = [0, 0], sizes = [1, 256], strides = [1, 1]} : vector<4x256xf32> to vector<1x256xf32>
    %133 = vector.extract_strided_slice %0 {offsets = [0, 0], sizes = [32, 1], strides = [1, 1]} : vector<32x4xf32> to vector<32x1xf32>
    %134 = vector.broadcast %132 : vector<1x256xf32> to vector<32x256xf32>
    %135 = vector.broadcast %133 : vector<32x1xf32> to vector<32x256xf32>
    %136 = arith.mulf %134, %135 : vector<32x256xf32>
    %137 = vector.extract_strided_slice %131 {offsets = [1, 0], sizes = [1, 256], strides = [1, 1]} : vector<4x256xf32> to vector<1x256xf32>
    %138 = vector.extract_strided_slice %0 {offsets = [0, 1], sizes = [32, 1], strides = [1, 1]} : vector<32x4xf32> to vector<32x1xf32>
    %139 = vector.broadcast %137 : vector<1x256xf32> to vector<32x256xf32>
    %140 = vector.broadcast %138 : vector<32x1xf32> to vector<32x256xf32>
    %141 = arith.mulf %139, %140 : vector<32x256xf32>
    %142 = arith.addf %136, %141 : vector<32x256xf32>
    %143 = vector.extract_strided_slice %131 {offsets = [2, 0], sizes = [1, 256], strides = [1, 1]} : vector<4x256xf32> to vector<1x256xf32>
    %144 = vector.extract_strided_slice %0 {offsets = [0, 2], sizes = [32, 1], strides = [1, 1]} : vector<32x4xf32> to vector<32x1xf32>
    %145 = vector.broadcast %143 : vector<1x256xf32> to vector<32x256xf32>
    %146 = vector.broadcast %144 : vector<32x1xf32> to vector<32x256xf32>
    %147 = arith.mulf %145, %146 : vector<32x256xf32>
    %148 = arith.addf %142, %147 : vector<32x256xf32>
    %149 = vector.extract_strided_slice %131 {offsets = [3, 0], sizes = [1, 256], strides = [1, 1]} : vector<4x256xf32> to vector<1x256xf32>
    %150 = vector.extract_strided_slice %0 {offsets = [0, 3], sizes = [32, 1], strides = [1, 1]} : vector<32x4xf32> to vector<32x1xf32>
    %151 = vector.broadcast %149 : vector<1x256xf32> to vector<32x256xf32>
    %152 = vector.broadcast %150 : vector<32x1xf32> to vector<32x256xf32>
    %153 = arith.mulf %151, %152 : vector<32x256xf32>
    %154 = arith.addf %148, %153 : vector<32x256xf32>
    %155 = vector.broadcast %1 : vector<32x1xf32> to vector<32x256xf32>
    %156 = arith.addf %154, %155 : vector<32x256xf32>
    %cst_29 = arith.constant 0.000000e+00 : f32
    %157 = vector.broadcast %cst_29 : f32 to vector<32x256xf32>
    %158 = arith.maximumf %156, %157 : vector<32x256xf32>
    %c4_30 = arith.constant 4 : index
    %c0_31 = arith.constant 0 : index
    %c0_32 = arith.constant 0 : index
    %159 = vector.load %arg4[%c4_30, %c0_31, %c0_32] : memref<8x32x256xf32, #tpu.memory_space<vmem>>, vector<1x32x256xf32>
    %160 = vector.shape_cast %159 : vector<1x32x256xf32> to vector<32x256xf32>
    %161 = vector.shape_cast %158 : vector<32x256xf32> to vector<1x32x256xf32>
    tpu.vector_store %arg4[%c4_30, %c0_31, %c0_32], %161 {strides = array<i32>} : memref<8x32x256xf32, #tpu.memory_space<vmem>>, vector<1x32x256xf32>,
    %c5 = arith.constant 5 : index
    %c0_33 = arith.constant 0 : index
    %c0_34 = arith.constant 0 : index
    %162 = vector.load %arg1[%c5, %c0_33, %c0_34] : memref<8x4x256xf32, #tpu.memory_space<vmem>>, vector<1x4x256xf32>
    %163 = vector.shape_cast %162 : vector<1x4x256xf32> to vector<4x256xf32>
    %164 = vector.extract_strided_slice %163 {offsets = [0, 0], sizes = [1, 256], strides = [1, 1]} : vector<4x256xf32> to vector<1x256xf32>
    %165 = vector.extract_strided_slice %0 {offsets = [0, 0], sizes = [32, 1], strides = [1, 1]} : vector<32x4xf32> to vector<32x1xf32>
    %166 = vector.broadcast %164 : vector<1x256xf32> to vector<32x256xf32>
    %167 = vector.broadcast %165 : vector<32x1xf32> to vector<32x256xf32>
    %168 = arith.mulf %166, %167 : vector<32x256xf32>
    %169 = vector.extract_strided_slice %163 {offsets = [1, 0], sizes = [1, 256], strides = [1, 1]} : vector<4x256xf32> to vector<1x256xf32>
    %170 = vector.extract_strided_slice %0 {offsets = [0, 1], sizes = [32, 1], strides = [1, 1]} : vector<32x4xf32> to vector<32x1xf32>
    %171 = vector.broadcast %169 : vector<1x256xf32> to vector<32x256xf32>
    %172 = vector.broadcast %170 : vector<32x1xf32> to vector<32x256xf32>
    %173 = arith.mulf %171, %172 : vector<32x256xf32>
    %174 = arith.addf %168, %173 : vector<32x256xf32>
    %175 = vector.extract_strided_slice %163 {offsets = [2, 0], sizes = [1, 256], strides = [1, 1]} : vector<4x256xf32> to vector<1x256xf32>
    %176 = vector.extract_strided_slice %0 {offsets = [0, 2], sizes = [32, 1], strides = [1, 1]} : vector<32x4xf32> to vector<32x1xf32>
    %177 = vector.broadcast %175 : vector<1x256xf32> to vector<32x256xf32>
    %178 = vector.broadcast %176 : vector<32x1xf32> to vector<32x256xf32>
    %179 = arith.mulf %177, %178 : vector<32x256xf32>
    %180 = arith.addf %174, %179 : vector<32x256xf32>
    %181 = vector.extract_strided_slice %163 {offsets = [3, 0], sizes = [1, 256], strides = [1, 1]} : vector<4x256xf32> to vector<1x256xf32>
    %182 = vector.extract_strided_slice %0 {offsets = [0, 3], sizes = [32, 1], strides = [1, 1]} : vector<32x4xf32> to vector<32x1xf32>
    %183 = vector.broadcast %181 : vector<1x256xf32> to vector<32x256xf32>
    %184 = vector.broadcast %182 : vector<32x1xf32> to vector<32x256xf32>
    %185 = arith.mulf %183, %184 : vector<32x256xf32>
    %186 = arith.addf %180, %185 : vector<32x256xf32>
    %187 = vector.broadcast %1 : vector<32x1xf32> to vector<32x256xf32>
    %188 = arith.addf %186, %187 : vector<32x256xf32>
    %cst_35 = arith.constant 0.000000e+00 : f32
    %189 = vector.broadcast %cst_35 : f32 to vector<32x256xf32>
    %190 = arith.maximumf %188, %189 : vector<32x256xf32>
    %c5_36 = arith.constant 5 : index
    %c0_37 = arith.constant 0 : index
    %c0_38 = arith.constant 0 : index
    %191 = vector.load %arg4[%c5_36, %c0_37, %c0_38] : memref<8x32x256xf32, #tpu.memory_space<vmem>>, vector<1x32x256xf32>
    %192 = vector.shape_cast %191 : vector<1x32x256xf32> to vector<32x256xf32>
    %193 = vector.shape_cast %190 : vector<32x256xf32> to vector<1x32x256xf32>
    tpu.vector_store %arg4[%c5_36, %c0_37, %c0_38], %193 {strides = array<i32>} : memref<8x32x256xf32, #tpu.memory_space<vmem>>, vector<1x32x256xf32>,
    %c6 = arith.constant 6 : index
    %c0_39 = arith.constant 0 : index
    %c0_40 = arith.constant 0 : index
    %194 = vector.load %arg1[%c6, %c0_39, %c0_40] : memref<8x4x256xf32, #tpu.memory_space<vmem>>, vector<1x4x256xf32>
    %195 = vector.shape_cast %194 : vector<1x4x256xf32> to vector<4x256xf32>
    %196 = vector.extract_strided_slice %195 {offsets = [0, 0], sizes = [1, 256], strides = [1, 1]} : vector<4x256xf32> to vector<1x256xf32>
    %197 = vector.extract_strided_slice %0 {offsets = [0, 0], sizes = [32, 1], strides = [1, 1]} : vector<32x4xf32> to vector<32x1xf32>
    %198 = vector.broadcast %196 : vector<1x256xf32> to vector<32x256xf32>
    %199 = vector.broadcast %197 : vector<32x1xf32> to vector<32x256xf32>
    %200 = arith.mulf %198, %199 : vector<32x256xf32>
    %201 = vector.extract_strided_slice %195 {offsets = [1, 0], sizes = [1, 256], strides = [1, 1]} : vector<4x256xf32> to vector<1x256xf32>
    %202 = vector.extract_strided_slice %0 {offsets = [0, 1], sizes = [32, 1], strides = [1, 1]} : vector<32x4xf32> to vector<32x1xf32>
    %203 = vector.broadcast %201 : vector<1x256xf32> to vector<32x256xf32>
    %204 = vector.broadcast %202 : vector<32x1xf32> to vector<32x256xf32>
    %205 = arith.mulf %203, %204 : vector<32x256xf32>
    %206 = arith.addf %200, %205 : vector<32x256xf32>
    %207 = vector.extract_strided_slice %195 {offsets = [2, 0], sizes = [1, 256], strides = [1, 1]} : vector<4x256xf32> to vector<1x256xf32>
    %208 = vector.extract_strided_slice %0 {offsets = [0, 2], sizes = [32, 1], strides = [1, 1]} : vector<32x4xf32> to vector<32x1xf32>
    %209 = vector.broadcast %207 : vector<1x256xf32> to vector<32x256xf32>
    %210 = vector.broadcast %208 : vector<32x1xf32> to vector<32x256xf32>
    %211 = arith.mulf %209, %210 : vector<32x256xf32>
    %212 = arith.addf %206, %211 : vector<32x256xf32>
    %213 = vector.extract_strided_slice %195 {offsets = [3, 0], sizes = [1, 256], strides = [1, 1]} : vector<4x256xf32> to vector<1x256xf32>
    %214 = vector.extract_strided_slice %0 {offsets = [0, 3], sizes = [32, 1], strides = [1, 1]} : vector<32x4xf32> to vector<32x1xf32>
    %215 = vector.broadcast %213 : vector<1x256xf32> to vector<32x256xf32>
    %216 = vector.broadcast %214 : vector<32x1xf32> to vector<32x256xf32>
    %217 = arith.mulf %215, %216 : vector<32x256xf32>
    %218 = arith.addf %212, %217 : vector<32x256xf32>
    %219 = vector.broadcast %1 : vector<32x1xf32> to vector<32x256xf32>
    %220 = arith.addf %218, %219 : vector<32x256xf32>
    %cst_41 = arith.constant 0.000000e+00 : f32
    %221 = vector.broadcast %cst_41 : f32 to vector<32x256xf32>
    %222 = arith.maximumf %220, %221 : vector<32x256xf32>
    %c6_42 = arith.constant 6 : index
    %c0_43 = arith.constant 0 : index
    %c0_44 = arith.constant 0 : index
    %223 = vector.load %arg4[%c6_42, %c0_43, %c0_44] : memref<8x32x256xf32, #tpu.memory_space<vmem>>, vector<1x32x256xf32>
    %224 = vector.shape_cast %223 : vector<1x32x256xf32> to vector<32x256xf32>
    %225 = vector.shape_cast %222 : vector<32x256xf32> to vector<1x32x256xf32>
    tpu.vector_store %arg4[%c6_42, %c0_43, %c0_44], %225 {strides = array<i32>} : memref<8x32x256xf32, #tpu.memory_space<vmem>>, vector<1x32x256xf32>,
    %c7 = arith.constant 7 : index
    %c0_45 = arith.constant 0 : index
    %c0_46 = arith.constant 0 : index
    %226 = vector.load %arg1[%c7, %c0_45, %c0_46] : memref<8x4x256xf32, #tpu.memory_space<vmem>>, vector<1x4x256xf32>
    %227 = vector.shape_cast %226 : vector<1x4x256xf32> to vector<4x256xf32>
    %228 = vector.extract_strided_slice %227 {offsets = [0, 0], sizes = [1, 256], strides = [1, 1]} : vector<4x256xf32> to vector<1x256xf32>
    %229 = vector.extract_strided_slice %0 {offsets = [0, 0], sizes = [32, 1], strides = [1, 1]} : vector<32x4xf32> to vector<32x1xf32>
    %230 = vector.broadcast %228 : vector<1x256xf32> to vector<32x256xf32>
    %231 = vector.broadcast %229 : vector<32x1xf32> to vector<32x256xf32>
    %232 = arith.mulf %230, %231 : vector<32x256xf32>
    %233 = vector.extract_strided_slice %227 {offsets = [1, 0], sizes = [1, 256], strides = [1, 1]} : vector<4x256xf32> to vector<1x256xf32>
    %234 = vector.extract_strided_slice %0 {offsets = [0, 1], sizes = [32, 1], strides = [1, 1]} : vector<32x4xf32> to vector<32x1xf32>
    %235 = vector.broadcast %233 : vector<1x256xf32> to vector<32x256xf32>
    %236 = vector.broadcast %234 : vector<32x1xf32> to vector<32x256xf32>
    %237 = arith.mulf %235, %236 : vector<32x256xf32>
    %238 = arith.addf %232, %237 : vector<32x256xf32>
    %239 = vector.extract_strided_slice %227 {offsets = [2, 0], sizes = [1, 256], strides = [1, 1]} : vector<4x256xf32> to vector<1x256xf32>
    %240 = vector.extract_strided_slice %0 {offsets = [0, 2], sizes = [32, 1], strides = [1, 1]} : vector<32x4xf32> to vector<32x1xf32>
    %241 = vector.broadcast %239 : vector<1x256xf32> to vector<32x256xf32>
    %242 = vector.broadcast %240 : vector<32x1xf32> to vector<32x256xf32>
    %243 = arith.mulf %241, %242 : vector<32x256xf32>
    %244 = arith.addf %238, %243 : vector<32x256xf32>
    %245 = vector.extract_strided_slice %227 {offsets = [3, 0], sizes = [1, 256], strides = [1, 1]} : vector<4x256xf32> to vector<1x256xf32>
    %246 = vector.extract_strided_slice %0 {offsets = [0, 3], sizes = [32, 1], strides = [1, 1]} : vector<32x4xf32> to vector<32x1xf32>
    %247 = vector.broadcast %245 : vector<1x256xf32> to vector<32x256xf32>
    %248 = vector.broadcast %246 : vector<32x1xf32> to vector<32x256xf32>
    %249 = arith.mulf %247, %248 : vector<32x256xf32>
    %250 = arith.addf %244, %249 : vector<32x256xf32>
    %251 = vector.broadcast %1 : vector<32x1xf32> to vector<32x256xf32>
    %252 = arith.addf %250, %251 : vector<32x256xf32>
    %cst_47 = arith.constant 0.000000e+00 : f32
    %253 = vector.broadcast %cst_47 : f32 to vector<32x256xf32>
    %254 = arith.maximumf %252, %253 : vector<32x256xf32>
    %c7_48 = arith.constant 7 : index
    %c0_49 = arith.constant 0 : index
    %c0_50 = arith.constant 0 : index
    %255 = vector.load %arg4[%c7_48, %c0_49, %c0_50] : memref<8x32x256xf32, #tpu.memory_space<vmem>>, vector<1x32x256xf32>
    %256 = vector.shape_cast %255 : vector<1x32x256xf32> to vector<32x256xf32>
    %257 = vector.shape_cast %254 : vector<32x256xf32> to vector<1x32x256xf32>
    tpu.vector_store %arg4[%c7_48, %c0_49, %c0_50], %257 {strides = array<i32>} : memref<8x32x256xf32, #tpu.memory_space<vmem>>, vector<1x32x256xf32>,
    return
  }
  func.func @transform_0(%arg0: i32) -> (i32, i32, i32) {
    %c0_i32 = arith.constant 0 : i32
    %c0_i32_0 = arith.constant 0 : i32
    %c0_i32_1 = arith.constant 0 : i32
    return %arg0, %c0_i32, %c0_i32_0 : i32, i32, i32
  }
  func.func @transform_1(%arg0: i32) -> (i32, i32) {
    %c0_i32 = arith.constant 0 : i32
    %c0_i32_0 = arith.constant 0 : i32
    %c0_i32_1 = arith.constant 0 : i32
    return %c0_i32, %c0_i32_0 : i32, i32
  }
  func.func @transform_2(%arg0: i32) -> (i32, i32) {
    %c0_i32 = arith.constant 0 : i32
    %c0_i32_0 = arith.constant 0 : i32
    %c0_i32_1 = arith.constant 0 : i32
    return %c0_i32, %c0_i32_0 : i32, i32
  }
  func.func @transform_3(%arg0: i32) -> (i32, i32, i32) {
    %c0_i32 = arith.constant 0 : i32
    %c0_i32_0 = arith.constant 0 : i32
    %c0_i32_1 = arith.constant 0 : i32
    return %arg0, %c0_i32, %c0_i32_0 : i32, i32, i32
  }
}

</mosaic_0001>

<llo_original>
// kernel: sequence_converter_forward.1
$region0: #{sequence_converter_forward.1}
  #allocation0 [shape = 'u32[]', space=smem, size = 0x4, offset = 0x4, fixed_abs, tag = 'smem constant byte address 0x4 - core index']
  #allocation1 [shape = 'u32[144,128]{1,0:T(1,128)}', space=vmem, size = 0x12000, scoped, tag = 'internal scratch']
  %s0 = inlined_call_operand.vmem [shape: f32[16,4,256], index: 0, kind: input, shape index: {}]
  %s1 = inlined_call_operand.vmem [shape: f32[32,4], index: 1, kind: input, shape index: {}]
  %s2 = inlined_call_operand.vmem [shape: f32[32,1], index: 2, kind: input, shape index: {}]
  %s3 = inlined_call_operand.vmem [shape: f32[16,32,256], index: 3, kind: output, shape index: {}]
  %s4 = sld [smem:[#allocation0]]
  $region45: #{sequence_converter_forward.1} parent=0
    _
  %s6 = ssub.s32 1, %s4
  %s7 = scalar_select 0, %s6, %s4
  loop: start=0, step=1, limit=4
  $region2: #{sequence_converter_forward.1} parent=0 // loop_pre_header
    _
  $region3: #{sequence_converter_forward.1} parent=0 // loop_header
    %s9 = sphi 0, %s13
    %p10 = scmp.ge.s32.totalorder %s9, 4
    %s19 = sphi 0, %s21
    %s22 = sphi 0, %s19
    %s23 = sphi 0, %s22
    %s39 = sphi 0, %s23
    %s43 = sphi 0, %s43
    %s45 = sphi 0, %s43
    %s46 = sphi 0, %s45
    %s60 = sphi 0, %s46
    %s64 = sphi 0, %s64
    %s66 = sphi 0, %s64
    %s67 = sphi 0, %s66
    %s81 = sphi 0, %s67
    %s87 = sphi 0, %s89
    %s90 = sphi 0, %s87
    %s91 = sphi 0, %s90
    %s107 = sphi 0, %s91
  $region4: #{sequence_converter_forward.1} parent=0 // loop_header_branch
    %12 = sbr.rel (%p10) target = $region8
  $region5: #{sequence_converter_forward.1} parent=0 // loop_body
    %s14 = ssub.s32 %s9, 1
    %s15 = ssub.s32 %s9, 2
    %s16 = sadd.s32 %s9, 1
    %s17 = ssub.s32 %s9, %s16
    %p18 = scmp.eq.s32.totalorder %s17, 0
    %s20 = sadd.s32 %s19, 1
    %s21 = scalar_select %p18, %s19, %s20
    %p24 = pneg %p18
    %p25 = scmp.eq.s32.totalorder %s9, 1
    %p26 = por %p24, %p25
    %p27 = scmp.ne.s32.totalorder %s19, %s22
    %p28 = scmp.eq.s32.totalorder %s9, 0
    %p29 = por %p27, %p28
    %p30 = scmp.ne.s32.totalorder %s19, %s22
    %p31 = scmp.eq.s32.totalorder %s14, 1
    %p32 = por %p30, %p31
    %p33 = scmp.ne.s32.totalorder %s22, %s23
    %p34 = scmp.eq.s32.totalorder %s14, 0
    %p35 = por %p33, %p34
    %p36 = scmp.ne.s32.totalorder %s22, %s23
    %p37 = scmp.eq.s32.totalorder %s15, 1
    %p38 = por %p36, %p37
    %p40 = scmp.ne.s32.totalorder %s23, %s39
    %p41 = scmp.eq.s32.totalorder %s15, 0
    %p42 = por %p40, %p41
    %s44 = sadd.s32 %s43, 1
    %p47 = scmp.eq.s32.totalorder %s9, 1
    %p48 = scmp.ne.s32.totalorder %s43, %s45
    %p49 = scmp.eq.s32.totalorder %s9, 0
    %p50 = por %p48, %p49
    %p51 = scmp.ne.s32.totalorder %s43, %s45
    %p52 = scmp.eq.s32.totalorder %s14, 1
    %p53 = por %p51, %p52
    %p54 = scmp.ne.s32.totalorder %s45, %s46
    %p55 = scmp.eq.s32.totalorder %s14, 0
    %p56 = por %p54, %p55
    %p57 = scmp.ne.s32.totalorder %s45, %s46
    %p58 = scmp.eq.s32.totalorder %s15, 1
    %p59 = por %p57, %p58
    %p61 = scmp.ne.s32.totalorder %s46, %s60
    %p62 = scmp.eq.s32.totalorder %s15, 0
    %p63 = por %p61, %p62
    %s65 = sadd.s32 %s64, 1
    %p68 = scmp.eq.s32.totalorder %s9, 1
    %p69 = scmp.ne.s32.totalorder %s64, %s66
    %p70 = scmp.eq.s32.totalorder %s9, 0
    %p71 = por %p69, %p70
    %p72 = scmp.ne.s32.totalorder %s64, %s66
    %p73 = scmp.eq.s32.totalorder %s14, 1
    %p74 = por %p72, %p73
    %p75 = scmp.ne.s32.totalorder %s66, %s67
    %p76 = scmp.eq.s32.totalorder %s14, 0
    %p77 = por %p75, %p76
    %p78 = scmp.ne.s32.totalorder %s66, %s67
    %p79 = scmp.eq.s32.totalorder %s15, 1
    %p80 = por %p78, %p79
    %p82 = scmp.ne.s32.totalorder %s67, %s81
    %p83 = scmp.eq.s32.totalorder %s15, 0
    %p84 = por %p82, %p83
    %s85 = ssub.s32 %s9, %s16
    %p86 = scmp.eq.s32.totalorder %s85, 0
    %s88 = sadd.s32 %s87, 1
    %s89 = scalar_select %p86, %s87, %s88
    %p92 = pneg %p86
    %p93 = scmp.eq.s32.totalorder %s9, 1
    %p94 = por %p92, %p93
    %p95 = scmp.ne.s32.totalorder %s87, %s90
    %p96 = scmp.eq.s32.totalorder %s9, 0
    %p97 = por %p95, %p96
    %p98 = scmp.ne.s32.totalorder %s87, %s90
    %p99 = scmp.eq.s32.totalorder %s14, 1
    %p100 = por %p98, %p99
    %p101 = scmp.ne.s32.totalorder %s90, %s91
    %p102 = scmp.eq.s32.totalorder %s14, 0
    %p103 = por %p101, %p102
    %p104 = scmp.ne.s32.totalorder %s90, %s91
    %p105 = scmp.eq.s32.totalorder %s15, 1
    %p106 = por %p104, %p105
    %p108 = scmp.ne.s32.totalorder %s91, %s107
    %p109 = scmp.eq.s32.totalorder %s15, 0
    %p110 = por %p108, %p109
    %p111 = scmp.le.s32.totalorder 1, %s9
    %p112 = scmp.lt.s32.totalorder %s9, 3
    %p113 = pnand %p111, %p112
    %p114 = pneg %p113
    // Predicated region
    $region9: #{sequence_converter_forward.1} parent=5 // pred_check
      _
    $region10: #{sequence_converter_forward.1} parent=5 // pred_check_branch
      %116 = sbr.rel (%p113) target = $region12
    $region11: #{sequence_converter_forward.1} parent=5 // pred_region
      %s117 = ssub.s32 %s9, 1
      // Predicated region
      $region13: #{sequence_converter_forward.1} parent=11 // pred_check
        %p118 = pneg %p56
      $region14: #{sequence_converter_forward.1} parent=11 // pred_check_branch
        %120 = sbr.rel (%p118) target = $region16
      $region15: #{sequence_converter_forward.1} parent=11 // pred_region
        _
      $region16: #{sequence_converter_forward.1} parent=11 // pred_fallthru
        _
      // Predicated region
      $region17: #{sequence_converter_forward.1} parent=11 // pred_check
        %p121 = pneg %p77
      $region18: #{sequence_converter_forward.1} parent=11 // pred_check_branch
        %123 = sbr.rel (%p121) target = $region20
      $region19: #{sequence_converter_forward.1} parent=11 // pred_region
        _
      $region20: #{sequence_converter_forward.1} parent=11 // pred_fallthru
        _
    $region12: #{sequence_converter_forward.1} parent=5 // pred_fallthru
      _
    %p124 = scmp.lt.s32.totalorder %s9, 2
    // Predicated region
    $region21: #{sequence_converter_forward.1} parent=5 // pred_check
      %p125 = pneg %p124
    $region22: #{sequence_converter_forward.1} parent=5 // pred_check_branch
      %127 = sbr.rel (%p125) target = $region24
    $region23: #{sequence_converter_forward.1} parent=5 // pred_region
      // Predicated region
      $region25: #{sequence_converter_forward.1} parent=23 // pred_check
        %p128 = pneg %p29
      $region26: #{sequence_converter_forward.1} parent=23 // pred_check_branch
        %130 = sbr.rel (%p128) target = $region28
      $region27: #{sequence_converter_forward.1} parent=23 // pred_region
        %s131 = smul.u32 8, %s9
        %p132 = scmp.lt.s32.totalorder %s131, 15
        %s133 = scalar_select %p132, %s131, 15
        %s134 = smul.addr %s133, 2
        %s135 = smul.addr %s134, 4
        %s136 = scalar_lea.vmem %s0, %s135
        %s137 = smul.u32 8, %s9
      $region28: #{sequence_converter_forward.1} parent=23 // pred_fallthru
        _
    $region24: #{sequence_converter_forward.1} parent=5 // pred_fallthru
      _
    %p138 = scmp.le.s32.totalorder 1, %s9
    %p139 = scmp.lt.s32.totalorder %s9, 3
    %p140 = pnand %p138, %p139
    %p141 = pneg %p140
    // Predicated region
    $region29: #{sequence_converter_forward.1} parent=5 // pred_check
      _
    $region30: #{sequence_converter_forward.1} parent=5 // pred_check_branch
      %143 = sbr.rel (%p140) target = $region32
    $region31: #{sequence_converter_forward.1} parent=5 // pred_region
      %s144 = ssub.s32 %s9, 1
      %s145 = smul.u32 8, %s14
      %p146 = scmp.lt.s32.totalorder %s145, 15
      %s147 = scalar_select %p146, %s145, 15
      %s148 = smul.addr %s147, 2
      %s149 = smul.addr %s148, 4
      %s150 = scalar_lea.vmem %s0, %s149
      %p151 = pneg %p35
      %p152 = pneg %p32
      %p153 = pneg %p56
      %p154 = pneg %p53
      %p155 = pneg %p77
      %p156 = pneg %p74
      %p157 = pneg %p103
      %p158 = pneg %p100
      %s159 = smul.u32 8, %s14
      %p160 = scmp.lt.s32.totalorder %s159, 15
      %s161 = scalar_select %p160, %s159, 15
      %s162 = smul.addr %s161, 8
      %s163 = smul.addr %s162, 8
      %s164 = scalar_lea.vmem %s3, %s163
      %s165 = smul.u32 8, %s14
      %p166 = scmp.lt.s32.totalorder %s165, 15
      %s167 = scalar_select %p166, %s165, 15
      %s168 = smul.addr %s167, 2
      %s169 = smul.addr %s168, 4
      %s170 = scalar_lea.vmem %s0, %s169
      %s171 = smul.u32 8, %s14
      %s172 = smul.u32 8, %s14
      %p173 = scmp.lt.s32.totalorder %s172, 15
      %s174 = scalar_select %p173, %s172, 15
      %s175 = smul.addr %s174, 8
      %s176 = smul.addr %s175, 8
      %s177 = scalar_lea.vmem %s3, %s176
      %s178 = smul.u32 8, %s14
      %v179 = vld [vmem:[%s1] sm:$0xff]
      %v180 = vld [vmem:[%s1 + $0x8] sm:$0xff]
      %v181 = vld [vmem:[%s1 + $0x10] sm:$0xff]
      %v182 = vld [vmem:[%s1 + $0x18] sm:$0xff]
      %v183 = vld [vmem:[%s2] sm:$0xff]
      %v184 = vld [vmem:[%s2 + $0x8] sm:$0xff]
      %v185 = vld [vmem:[%s2 + $0x10] sm:$0xff]
      %v186 = vld [vmem:[%s2 + $0x18] sm:$0xff]
      %v187 = vld [vmem:[%s170] sm:$0xff]
      %v189 = vlaneseq
      %v190 = vshrl.u32 %v189, 7
      %v191 = vsub.s32 0, %v190
      %v192 = vrot.slane %v187, %v191
      %v193 = vlaneseq
      %v194 = vshrl.u32 %v193, 7
      %v195 = vsub.s32 4, %v194
      %v196 = vrot.slane %v187, %v195
      %v199 = vlaneseq
      %v200 = vshrl.u32 %v199, 7
      %v201 = vsub.s32 0, %v200
      %v202 = vrot.slane %v192, %v201
      %v203 = vlaneseq
      %v204 = vshrl.u32 %v203, 7
      %v205 = vsub.s32 0, %v204
      %v206 = vrot.slane %v196, %v205
      %208 = vset.pattern.permute.xlu0 0
      %209 = vperm.xlu0 %208, %v179
      %v210 = vpop.permute.xlu0 %209
      %213 = vset.pattern.permute.xlu0 0
      %214 = vperm.xlu0 %213, %v180
      %v215 = vpop.permute.xlu0 %214
      %218 = vset.pattern.permute.xlu0 0
      %219 = vperm.xlu0 %218, %v181
      %v220 = vpop.permute.xlu0 %219
      %223 = vset.pattern.permute.xlu0 0
      %224 = vperm.xlu0 %223, %v182
      %v225 = vpop.permute.xlu0 %224
      %v227 = vmul.f32 %v202, %v210
      %v228 = vmul.f32 %v206, %v210
      %v229 = vmul.f32 %v202, %v215
      %v230 = vmul.f32 %v206, %v215
      %v231 = vmul.f32 %v202, %v220
      %v232 = vmul.f32 %v206, %v220
      %v233 = vmul.f32 %v202, %v225
      %v234 = vmul.f32 %v206, %v225
      %v235 = vlaneseq
      %v236 = vshrl.u32 %v235, 7
      %v237 = vsub.s32 1, %v236
      %v238 = vrot.slane %v187, %v237
      %v239 = vlaneseq
      %v240 = vshrl.u32 %v239, 7
      %v241 = vsub.s32 5, %v240
      %v242 = vrot.slane %v187, %v241
      %v245 = vlaneseq
      %v246 = vshrl.u32 %v245, 7
      %v247 = vsub.s32 1, %v246
      %v248 = vrot.slane %v238, %v247
      %v249 = vlaneseq
      %v250 = vshrl.u32 %v249, 7
      %v251 = vsub.s32 1, %v250
      %v252 = vrot.slane %v242, %v251
      %253 = vset.pattern.permute.xlu0 1
      %254 = vperm.xlu0 %253, %v179
      %v255 = vpop.permute.xlu0 %254
      %257 = vset.pattern.permute.xlu0 1
      %258 = vperm.xlu0 %257, %v180
      %v259 = vpop.permute.xlu0 %258
      %261 = vset.pattern.permute.xlu0 1
      %262 = vperm.xlu0 %261, %v181
      %v263 = vpop.permute.xlu0 %262
      %265 = vset.pattern.permute.xlu0 1
      %266 = vperm.xlu0 %265, %v182
      %v267 = vpop.permute.xlu0 %266
      %v269 = vmul.f32 %v248, %v255
      %v270 = vmul.f32 %v252, %v255
      %v271 = vmul.f32 %v248, %v259
      %v272 = vmul.f32 %v252, %v259
      %v273 = vmul.f32 %v248, %v263
      %v274 = vmul.f32 %v252, %v263
      %v275 = vmul.f32 %v248, %v267
      %v276 = vmul.f32 %v252, %v267
      %v277 = vadd.f32 %v227, %v269
      %v278 = vadd.f32 %v228, %v270
      %v279 = vadd.f32 %v229, %v271
      %v280 = vadd.f32 %v230, %v272
      %v281 = vadd.f32 %v231, %v273
      %v282 = vadd.f32 %v232, %v274
      %v283 = vadd.f32 %v233, %v275
      %v284 = vadd.f32 %v234, %v276
      %v285 = vlaneseq
      %v286 = vshrl.u32 %v285, 7
      %v287 = vsub.s32 2, %v286
      %v288 = vrot.slane %v187, %v287
      %v289 = vlaneseq
      %v290 = vshrl.u32 %v289, 7
      %v291 = vsub.s32 6, %v290
      %v292 = vrot.slane %v187, %v291
      %v295 = vlaneseq
      %v296 = vshrl.u32 %v295, 7
      %v297 = vsub.s32 2, %v296
      %v298 = vrot.slane %v288, %v297
      %v299 = vlaneseq
      %v300 = vshrl.u32 %v299, 7
      %v301 = vsub.s32 2, %v300
      %v302 = vrot.slane %v292, %v301
      %303 = vset.pattern.permute.xlu0 2
      %304 = vperm.xlu0 %303, %v179
      %v305 = vpop.permute.xlu0 %304
      %307 = vset.pattern.permute.xlu0 2
      %308 = vperm.xlu0 %307, %v180
      %v309 = vpop.permute.xlu0 %308
      %311 = vset.pattern.permute.xlu0 2
      %312 = vperm.xlu0 %311, %v181
      %v313 = vpop.permute.xlu0 %312
      %315 = vset.pattern.permute.xlu0 2
      %316 = vperm.xlu0 %315, %v182
      %v317 = vpop.permute.xlu0 %316
      %v319 = vmul.f32 %v298, %v305
      %v320 = vmul.f32 %v302, %v305
      %v321 = vmul.f32 %v298, %v309
      %v322 = vmul.f32 %v302, %v309
      %v323 = vmul.f32 %v298, %v313
      %v324 = vmul.f32 %v302, %v313
      %v325 = vmul.f32 %v298, %v317
      %v326 = vmul.f32 %v302, %v317
      %v327 = vadd.f32 %v277, %v319
      %v328 = vadd.f32 %v278, %v320
      %v329 = vadd.f32 %v279, %v321
      %v330 = vadd.f32 %v280, %v322
      %v331 = vadd.f32 %v281, %v323
      %v332 = vadd.f32 %v282, %v324
      %v333 = vadd.f32 %v283, %v325
      %v334 = vadd.f32 %v284, %v326
      %v335 = vlaneseq
      %v336 = vshrl.u32 %v335, 7
      %v337 = vsub.s32 3, %v336
      %v338 = vrot.slane %v187, %v337
      %v339 = vlaneseq
      %v340 = vshrl.u32 %v339, 7
      %v341 = vsub.s32 7, %v340
      %v342 = vrot.slane %v187, %v341
      %v345 = vlaneseq
      %v346 = vshrl.u32 %v345, 7
      %v347 = vsub.s32 3, %v346
      %v348 = vrot.slane %v338, %v347
      %v349 = vlaneseq
      %v350 = vshrl.u32 %v349, 7
      %v351 = vsub.s32 3, %v350
      %v352 = vrot.slane %v342, %v351
      %353 = vset.pattern.permute.xlu0 3
      %354 = vperm.xlu0 %353, %v179
      %v355 = vpop.permute.xlu0 %354
      %357 = vset.pattern.permute.xlu0 3
      %358 = vperm.xlu0 %357, %v180
      %v359 = vpop.permute.xlu0 %358
      %361 = vset.pattern.permute.xlu0 3
      %362 = vperm.xlu0 %361, %v181
      %v363 = vpop.permute.xlu0 %362
      %365 = vset.pattern.permute.xlu0 3
      %366 = vperm.xlu0 %365, %v182
      %v367 = vpop.permute.xlu0 %366
      %v369 = vmul.f32 %v348, %v355
      %v370 = vmul.f32 %v352, %v355
      %v371 = vmul.f32 %v348, %v359
      %v372 = vmul.f32 %v352, %v359
      %v373 = vmul.f32 %v348, %v363
      %v374 = vmul.f32 %v352, %v363
      %v375 = vmul.f32 %v348, %v367
      %v376 = vmul.f32 %v352, %v367
      %v377 = vadd.f32 %v327, %v369
      %v378 = vadd.f32 %v328, %v370
      %v379 = vadd.f32 %v329, %v371
      %v380 = vadd.f32 %v330, %v372
      %v381 = vadd.f32 %v331, %v373
      %v382 = vadd.f32 %v332, %v374
      %v383 = vadd.f32 %v333, %v375
      %v384 = vadd.f32 %v334, %v376
      %386 = vset.pattern.permute.xlu0 0
      %387 = vperm.xlu0 %386, %v183
      %v388 = vpop.permute.xlu0 %387
      %391 = vset.pattern.permute.xlu0 0
      %392 = vperm.xlu0 %391, %v184
      %v393 = vpop.permute.xlu0 %392
      %396 = vset.pattern.permute.xlu0 0
      %397 = vperm.xlu0 %396, %v185
      %v398 = vpop.permute.xlu0 %397
      %401 = vset.pattern.permute.xlu0 0
      %402 = vperm.xlu0 %401, %v186
      %v403 = vpop.permute.xlu0 %402
      %v405 = vadd.f32 %v377, %v388
      %v406 = vadd.f32 %v378, %v388
      %v407 = vadd.f32 %v379, %v393
      %v408 = vadd.f32 %v380, %v393
      %v409 = vadd.f32 %v381, %v398
      %v410 = vadd.f32 %v382, %v398
      %v411 = vadd.f32 %v383, %v403
      %v412 = vadd.f32 %v384, %v403
      %v413 = vmax.f32 %v405, 0.0
      %v414 = vmax.f32 %v406, 0.0
      %v415 = vmax.f32 %v407, 0.0
      %v416 = vmax.f32 %v408, 0.0
      %v417 = vmax.f32 %v409, 0.0
      %v418 = vmax.f32 %v410, 0.0
      %v419 = vmax.f32 %v411, 0.0
      %v420 = vmax.f32 %v412, 0.0
      %421 = vst [vmem:[%s177] sm:$0xff] %v413
      %422 = vst [vmem:[%s177 + $0x8] sm:$0xff] %v414
      %423 = vst [vmem:[%s177 + $0x10] sm:$0xff] %v415
      %424 = vst [vmem:[%s177 + $0x18] sm:$0xff] %v416
      %425 = vst [vmem:[%s177 + $0x20] sm:$0xff] %v417
      %426 = vst [vmem:[%s177 + $0x28] sm:$0xff] %v418
      %427 = vst [vmem:[%s177 + $0x30] sm:$0xff] %v419
      %428 = vst [vmem:[%s177 + $0x38] sm:$0xff] %v420
      %s429 = scalar_lea.vmem %s170, 8
      %v430 = vld [vmem:[%s429] sm:$0xff]
      %v432 = vlaneseq
      %v433 = vshrl.u32 %v432, 7
      %v434 = vsub.s32 0, %v433
      %v435 = vrot.slane %v430, %v434
      %v436 = vlaneseq
      %v437 = vshrl.u32 %v436, 7
      %v438 = vsub.s32 4, %v437
      %v439 = vrot.slane %v430, %v438
      %v442 = vlaneseq
      %v443 = vshrl.u32 %v442, 7
      %v444 = vsub.s32 0, %v443
      %v445 = vrot.slane %v435, %v444
      %v446 = vlaneseq
      %v447 = vshrl.u32 %v446, 7
      %v448 = vsub.s32 0, %v447
      %v449 = vrot.slane %v439, %v448
      %v450 = vmul.f32 %v445, %v210
      %v451 = vmul.f32 %v449, %v210
      %v452 = vmul.f32 %v445, %v215
      %v453 = vmul.f32 %v449, %v215
      %v454 = vmul.f32 %v445, %v220
      %v455 = vmul.f32 %v449, %v220
      %v456 = vmul.f32 %v445, %v225
      %v457 = vmul.f32 %v449, %v225
      %v458 = vlaneseq
      %v459 = vshrl.u32 %v458, 7
      %v460 = vsub.s32 1, %v459
      %v461 = vrot.slane %v430, %v460
      %v462 = vlaneseq
      %v463 = vshrl.u32 %v462, 7
      %v464 = vsub.s32 5, %v463
      %v465 = vrot.slane %v430, %v464
      %v468 = vlaneseq
      %v469 = vshrl.u32 %v468, 7
      %v470 = vsub.s32 1, %v469
      %v471 = vrot.slane %v461, %v470
      %v472 = vlaneseq
      %v473 = vshrl.u32 %v472, 7
      %v474 = vsub.s32 1, %v473
      %v475 = vrot.slane %v465, %v474
      %v476 = vmul.f32 %v471, %v255
      %v477 = vmul.f32 %v475, %v255
      %v478 = vmul.f32 %v471, %v259
      %v479 = vmul.f32 %v475, %v259
      %v480 = vmul.f32 %v471, %v263
      %v481 = vmul.f32 %v475, %v263
      %v482 = vmul.f32 %v471, %v267
      %v483 = vmul.f32 %v475, %v267
      %v484 = vadd.f32 %v450, %v476
      %v485 = vadd.f32 %v451, %v477
      %v486 = vadd.f32 %v452, %v478
      %v487 = vadd.f32 %v453, %v479
      %v488 = vadd.f32 %v454, %v480
      %v489 = vadd.f32 %v455, %v481
      %v490 = vadd.f32 %v456, %v482
      %v491 = vadd.f32 %v457, %v483
      %v492 = vlaneseq
      %v493 = vshrl.u32 %v492, 7
      %v494 = vsub.s32 2, %v493
      %v495 = vrot.slane %v430, %v494
      %v496 = vlaneseq
      %v497 = vshrl.u32 %v496, 7
      %v498 = vsub.s32 6, %v497
      %v499 = vrot.slane %v430, %v498
      %v502 = vlaneseq
      %v503 = vshrl.u32 %v502, 7
      %v504 = vsub.s32 2, %v503
      %v505 = vrot.slane %v495, %v504
      %v506 = vlaneseq
      %v507 = vshrl.u32 %v506, 7
      %v508 = vsub.s32 2, %v507
      %v509 = vrot.slane %v499, %v508
      %v510 = vmul.f32 %v505, %v305
      %v511 = vmul.f32 %v509, %v305
      %v512 = vmul.f32 %v505, %v309
      %v513 = vmul.f32 %v509, %v309
      %v514 = vmul.f32 %v505, %v313
      %v515 = vmul.f32 %v509, %v313
      %v516 = vmul.f32 %v505, %v317
      %v517 = vmul.f32 %v509, %v317
      %v518 = vadd.f32 %v484, %v510
      %v519 = vadd.f32 %v485, %v511
      %v520 = vadd.f32 %v486, %v512
      %v521 = vadd.f32 %v487, %v513
      %v522 = vadd.f32 %v488, %v514
      %v523 = vadd.f32 %v489, %v515
      %v524 = vadd.f32 %v490, %v516
      %v525 = vadd.f32 %v491, %v517
      %v526 = vlaneseq
      %v527 = vshrl.u32 %v526, 7
      %v528 = vsub.s32 3, %v527
      %v529 = vrot.slane %v430, %v528
      %v530 = vlaneseq
      %v531 = vshrl.u32 %v530, 7
      %v532 = vsub.s32 7, %v531
      %v533 = vrot.slane %v430, %v532
      %v536 = vlaneseq
      %v537 = vshrl.u32 %v536, 7
      %v538 = vsub.s32 3, %v537
      %v539 = vrot.slane %v529, %v538
      %v540 = vlaneseq
      %v541 = vshrl.u32 %v540, 7
      %v542 = vsub.s32 3, %v541
      %v543 = vrot.slane %v533, %v542
      %v544 = vmul.f32 %v539, %v355
      %v545 = vmul.f32 %v543, %v355
      %v546 = vmul.f32 %v539, %v359
      %v547 = vmul.f32 %v543, %v359
      %v548 = vmul.f32 %v539, %v363
      %v549 = vmul.f32 %v543, %v363
      %v550 = vmul.f32 %v539, %v367
      %v551 = vmul.f32 %v543, %v367
      %v552 = vadd.f32 %v518, %v544
      %v553 = vadd.f32 %v519, %v545
      %v554 = vadd.f32 %v520, %v546
      %v555 = vadd.f32 %v521, %v547
      %v556 = vadd.f32 %v522, %v548
      %v557 = vadd.f32 %v523, %v549
      %v558 = vadd.f32 %v524, %v550
      %v559 = vadd.f32 %v525, %v551
      %v560 = vadd.f32 %v552, %v388
      %v561 = vadd.f32 %v553, %v388
      %v562 = vadd.f32 %v554, %v393
      %v563 = vadd.f32 %v555, %v393
      %v564 = vadd.f32 %v556, %v398
      %v565 = vadd.f32 %v557, %v398
      %v566 = vadd.f32 %v558, %v403
      %v567 = vadd.f32 %v559, %v403
      %v568 = vmax.f32 %v560, 0.0
      %v569 = vmax.f32 %v561, 0.0
      %v570 = vmax.f32 %v562, 0.0
      %v571 = vmax.f32 %v563, 0.0
      %v572 = vmax.f32 %v564, 0.0
      %v573 = vmax.f32 %v565, 0.0
      %v574 = vmax.f32 %v566, 0.0
      %v575 = vmax.f32 %v567, 0.0
      %s576 = scalar_lea.vmem %s177, 64
      %577 = vst [vmem:[%s576] sm:$0xff] %v568
      %578 = vst [vmem:[%s576 + $0x8] sm:$0xff] %v569
      %579 = vst [vmem:[%s576 + $0x10] sm:$0xff] %v570
      %580 = vst [vmem:[%s576 + $0x18] sm:$0xff] %v571
      %581 = vst [vmem:[%s576 + $0x20] sm:$0xff] %v572
      %582 = vst [vmem:[%s576 + $0x28] sm:$0xff] %v573
      %583 = vst [vmem:[%s576 + $0x30] sm:$0xff] %v574
      %584 = vst [vmem:[%s576 + $0x38] sm:$0xff] %v575
      %s585 = scalar_lea.vmem %s170, 16
      %v586 = vld [vmem:[%s585] sm:$0xff]
      %v588 = vlaneseq
      %v589 = vshrl.u32 %v588, 7
      %v590 = vsub.s32 0, %v589
      %v591 = vrot.slane %v586, %v590
      %v592 = vlaneseq
      %v593 = vshrl.u32 %v592, 7
      %v594 = vsub.s32 4, %v593
      %v595 = vrot.slane %v586, %v594
      %v598 = vlaneseq
      %v599 = vshrl.u32 %v598, 7
      %v600 = vsub.s32 0, %v599
      %v601 = vrot.slane %v591, %v600
      %v602 = vlaneseq
      %v603 = vshrl.u32 %v602, 7
      %v604 = vsub.s32 0, %v603
      %v605 = vrot.slane %v595, %v604
      %v606 = vmul.f32 %v601, %v210
      %v607 = vmul.f32 %v605, %v210
      %v608 = vmul.f32 %v601, %v215
      %v609 = vmul.f32 %v605, %v215
      %v610 = vmul.f32 %v601, %v220
      %v611 = vmul.f32 %v605, %v220
      %v612 = vmul.f32 %v601, %v225
      %v613 = vmul.f32 %v605, %v225
      %v614 = vlaneseq
      %v615 = vshrl.u32 %v614, 7
      %v616 = vsub.s32 1, %v615
      %v617 = vrot.slane %v586, %v616
      %v618 = vlaneseq
      %v619 = vshrl.u32 %v618, 7
      %v620 = vsub.s32 5, %v619
      %v621 = vrot.slane %v586, %v620
      %v624 = vlaneseq
      %v625 = vshrl.u32 %v624, 7
      %v626 = vsub.s32 1, %v625
      %v627 = vrot.slane %v617, %v626
      %v628 = vlaneseq
      %v629 = vshrl.u32 %v628, 7
      %v630 = vsub.s32 1, %v629
      %v631 = vrot.slane %v621, %v630
      %v632 = vmul.f32 %v627, %v255
      %v633 = vmul.f32 %v631, %v255
      %v634 = vmul.f32 %v627, %v259
      %v635 = vmul.f32 %v631, %v259
      %v636 = vmul.f32 %v627, %v263
      %v637 = vmul.f32 %v631, %v263
      %v638 = vmul.f32 %v627, %v267
      %v639 = vmul.f32 %v631, %v267
      %v640 = vadd.f32 %v606, %v632
      %v641 = vadd.f32 %v607, %v633
      %v642 = vadd.f32 %v608, %v634
      %v643 = vadd.f32 %v609, %v635
      %v644 = vadd.f32 %v610, %v636
      %v645 = vadd.f32 %v611, %v637
      %v646 = vadd.f32 %v612, %v638
      %v647 = vadd.f32 %v613, %v639
      %v648 = vlaneseq
      %v649 = vshrl.u32 %v648, 7
      %v650 = vsub.s32 2, %v649
      %v651 = vrot.slane %v586, %v650
      %v652 = vlaneseq
      %v653 = vshrl.u32 %v652, 7
      %v654 = vsub.s32 6, %v653
      %v655 = vrot.slane %v586, %v654
      %v658 = vlaneseq
      %v659 = vshrl.u32 %v658, 7
      %v660 = vsub.s32 2, %v659
      %v661 = vrot.slane %v651, %v660
      %v662 = vlaneseq
      %v663 = vshrl.u32 %v662, 7
      %v664 = vsub.s32 2, %v663
      %v665 = vrot.slane %v655, %v664
      %v666 = vmul.f32 %v661, %v305
      %v667 = vmul.f32 %v665, %v305
      %v668 = vmul.f32 %v661, %v309
      %v669 = vmul.f32 %v665, %v309
      %v670 = vmul.f32 %v661, %v313
      %v671 = vmul.f32 %v665, %v313
      %v672 = vmul.f32 %v661, %v317
      %v673 = vmul.f32 %v665, %v317
      %v674 = vadd.f32 %v640, %v666
      %v675 = vadd.f32 %v641, %v667
      %v676 = vadd.f32 %v642, %v668
      %v677 = vadd.f32 %v643, %v669
      %v678 = vadd.f32 %v644, %v670
      %v679 = vadd.f32 %v645, %v671
      %v680 = vadd.f32 %v646, %v672
      %v681 = vadd.f32 %v647, %v673
      %v682 = vlaneseq
      %v683 = vshrl.u32 %v682, 7
      %v684 = vsub.s32 3, %v683
      %v685 = vrot.slane %v586, %v684
      %v686 = vlaneseq
      %v687 = vshrl.u32 %v686, 7
      %v688 = vsub.s32 7, %v687
      %v689 = vrot.slane %v586, %v688
      %v692 = vlaneseq
      %v693 = vshrl.u32 %v692, 7
      %v694 = vsub.s32 3, %v693
      %v695 = vrot.slane %v685, %v694
      %v696 = vlaneseq
      %v697 = vshrl.u32 %v696, 7
      %v698 = vsub.s32 3, %v697
      %v699 = vrot.slane %v689, %v698
      %v700 = vmul.f32 %v695, %v355
      %v701 = vmul.f32 %v699, %v355
      %v702 = vmul.f32 %v695, %v359
      %v703 = vmul.f32 %v699, %v359
      %v704 = vmul.f32 %v695, %v363
      %v705 = vmul.f32 %v699, %v363
      %v706 = vmul.f32 %v695, %v367
      %v707 = vmul.f32 %v699, %v367
      %v708 = vadd.f32 %v674, %v700
      %v709 = vadd.f32 %v675, %v701
      %v710 = vadd.f32 %v676, %v702
      %v711 = vadd.f32 %v677, %v703
      %v712 = vadd.f32 %v678, %v704
      %v713 = vadd.f32 %v679, %v705
      %v714 = vadd.f32 %v680, %v706
      %v715 = vadd.f32 %v681, %v707
      %v716 = vadd.f32 %v708, %v388
      %v717 = vadd.f32 %v709, %v388
      %v718 = vadd.f32 %v710, %v393
      %v719 = vadd.f32 %v711, %v393
      %v720 = vadd.f32 %v712, %v398
      %v721 = vadd.f32 %v713, %v398
      %v722 = vadd.f32 %v714, %v403
      %v723 = vadd.f32 %v715, %v403
      %v724 = vmax.f32 %v716, 0.0
      %v725 = vmax.f32 %v717, 0.0
      %v726 = vmax.f32 %v718, 0.0
      %v727 = vmax.f32 %v719, 0.0
      %v728 = vmax.f32 %v720, 0.0
      %v729 = vmax.f32 %v721, 0.0
      %v730 = vmax.f32 %v722, 0.0
      %v731 = vmax.f32 %v723, 0.0
      %s732 = scalar_lea.vmem %s177, 128
      %733 = vst [vmem:[%s732] sm:$0xff] %v724
      %734 = vst [vmem:[%s732 + $0x8] sm:$0xff] %v725
      %735 = vst [vmem:[%s732 + $0x10] sm:$0xff] %v726
      %736 = vst [vmem:[%s732 + $0x18] sm:$0xff] %v727
      %737 = vst [vmem:[%s732 + $0x20] sm:$0xff] %v728
      %738 = vst [vmem:[%s732 + $0x28] sm:$0xff] %v729
      %739 = vst [vmem:[%s732 + $0x30] sm:$0xff] %v730
      %740 = vst [vmem:[%s732 + $0x38] sm:$0xff] %v731
      %s741 = scalar_lea.vmem %s170, 24
      %v742 = vld [vmem:[%s741] sm:$0xff]
      %v744 = vlaneseq
      %v745 = vshrl.u32 %v744, 7
      %v746 = vsub.s32 0, %v745
      %v747 = vrot.slane %v742, %v746
      %v748 = vlaneseq
      %v749 = vshrl.u32 %v748, 7
      %v750 = vsub.s32 4, %v749
      %v751 = vrot.slane %v742, %v750
      %v754 = vlaneseq
      %v755 = vshrl.u32 %v754, 7
      %v756 = vsub.s32 0, %v755
      %v757 = vrot.slane %v747, %v756
      %v758 = vlaneseq
      %v759 = vshrl.u32 %v758, 7
      %v760 = vsub.s32 0, %v759
      %v761 = vrot.slane %v751, %v760
      %v762 = vmul.f32 %v757, %v210
      %v763 = vmul.f32 %v761, %v210
      %v764 = vmul.f32 %v757, %v215
      %v765 = vmul.f32 %v761, %v215
      %v766 = vmul.f32 %v757, %v220
      %v767 = vmul.f32 %v761, %v220
      %v768 = vmul.f32 %v757, %v225
      %v769 = vmul.f32 %v761, %v225
      %v770 = vlaneseq
      %v771 = vshrl.u32 %v770, 7
      %v772 = vsub.s32 1, %v771
      %v773 = vrot.slane %v742, %v772
      %v774 = vlaneseq
      %v775 = vshrl.u32 %v774, 7
      %v776 = vsub.s32 5, %v775
      %v777 = vrot.slane %v742, %v776
      %v780 = vlaneseq
      %v781 = vshrl.u32 %v780, 7
      %v782 = vsub.s32 1, %v781
      %v783 = vrot.slane %v773, %v782
      %v784 = vlaneseq
      %v785 = vshrl.u32 %v784, 7
      %v786 = vsub.s32 1, %v785
      %v787 = vrot.slane %v777, %v786
      %v788 = vmul.f32 %v783, %v255
      %v789 = vmul.f32 %v787, %v255
      %v790 = vmul.f32 %v783, %v259
      %v791 = vmul.f32 %v787, %v259
      %v792 = vmul.f32 %v783, %v263
      %v793 = vmul.f32 %v787, %v263
      %v794 = vmul.f32 %v783, %v267
      %v795 = vmul.f32 %v787, %v267
      %v796 = vadd.f32 %v762, %v788
      %v797 = vadd.f32 %v763, %v789
      %v798 = vadd.f32 %v764, %v790
      %v799 = vadd.f32 %v765, %v791
      %v800 = vadd.f32 %v766, %v792
      %v801 = vadd.f32 %v767, %v793
      %v802 = vadd.f32 %v768, %v794
      %v803 = vadd.f32 %v769, %v795
      %v804 = vlaneseq
      %v805 = vshrl.u32 %v804, 7
      %v806 = vsub.s32 2, %v805
      %v807 = vrot.slane %v742, %v806
      %v808 = vlaneseq
      %v809 = vshrl.u32 %v808, 7
      %v810 = vsub.s32 6, %v809
      %v811 = vrot.slane %v742, %v810
      %v814 = vlaneseq
      %v815 = vshrl.u32 %v814, 7
      %v816 = vsub.s32 2, %v815
      %v817 = vrot.slane %v807, %v816
      %v818 = vlaneseq
      %v819 = vshrl.u32 %v818, 7
      %v820 = vsub.s32 2, %v819
      %v821 = vrot.slane %v811, %v820
      %v822 = vmul.f32 %v817, %v305
      %v823 = vmul.f32 %v821, %v305
      %v824 = vmul.f32 %v817, %v309
      %v825 = vmul.f32 %v821, %v309
      %v826 = vmul.f32 %v817, %v313
      %v827 = vmul.f32 %v821, %v313
      %v828 = vmul.f32 %v817, %v317
      %v829 = vmul.f32 %v821, %v317
      %v830 = vadd.f32 %v796, %v822
      %v831 = vadd.f32 %v797, %v823
      %v832 = vadd.f32 %v798, %v824
      %v833 = vadd.f32 %v799, %v825
      %v834 = vadd.f32 %v800, %v826
      %v835 = vadd.f32 %v801, %v827
      %v836 = vadd.f32 %v802, %v828
      %v837 = vadd.f32 %v803, %v829
      %v838 = vlaneseq
      %v839 = vshrl.u32 %v838, 7
      %v840 = vsub.s32 3, %v839
      %v841 = vrot.slane %v742, %v840
      %v842 = vlaneseq
      %v843 = vshrl.u32 %v842, 7
      %v844 = vsub.s32 7, %v843
      %v845 = vrot.slane %v742, %v844
      %v848 = vlaneseq
      %v849 = vshrl.u32 %v848, 7
      %v850 = vsub.s32 3, %v849
      %v851 = vrot.slane %v841, %v850
      %v852 = vlaneseq
      %v853 = vshrl.u32 %v852, 7
      %v854 = vsub.s32 3, %v853
      %v855 = vrot.slane %v845, %v854
      %v856 = vmul.f32 %v851, %v355
      %v857 = vmul.f32 %v855, %v355
      %v858 = vmul.f32 %v851, %v359
      %v859 = vmul.f32 %v855, %v359
      %v860 = vmul.f32 %v851, %v363
      %v861 = vmul.f32 %v855, %v363
      %v862 = vmul.f32 %v851, %v367
      %v863 = vmul.f32 %v855, %v367
      %v864 = vadd.f32 %v830, %v856
      %v865 = vadd.f32 %v831, %v857
      %v866 = vadd.f32 %v832, %v858
      %v867 = vadd.f32 %v833, %v859
      %v868 = vadd.f32 %v834, %v860
      %v869 = vadd.f32 %v835, %v861
      %v870 = vadd.f32 %v836, %v862
      %v871 = vadd.f32 %v837, %v863
      %v872 = vadd.f32 %v864, %v388
      %v873 = vadd.f32 %v865, %v388
      %v874 = vadd.f32 %v866, %v393
      %v875 = vadd.f32 %v867, %v393
      %v876 = vadd.f32 %v868, %v398
      %v877 = vadd.f32 %v869, %v398
      %v878 = vadd.f32 %v870, %v403
      %v879 = vadd.f32 %v871, %v403
      %v880 = vmax.f32 %v872, 0.0
      %v881 = vmax.f32 %v873, 0.0
      %v882 = vmax.f32 %v874, 0.0
      %v883 = vmax.f32 %v875, 0.0
      %v884 = vmax.f32 %v876, 0.0
      %v885 = vmax.f32 %v877, 0.0
      %v886 = vmax.f32 %v878, 0.0
      %v887 = vmax.f32 %v879, 0.0
      %s888 = scalar_lea.vmem %s177, 192
      %889 = vst [vmem:[%s888] sm:$0xff] %v880
      %890 = vst [vmem:[%s888 + $0x8] sm:$0xff] %v881
      %891 = vst [vmem:[%s888 + $0x10] sm:$0xff] %v882
      %892 = vst [vmem:[%s888 + $0x18] sm:$0xff] %v883
      %893 = vst [vmem:[%s888 + $0x20] sm:$0xff] %v884
      %894 = vst [vmem:[%s888 + $0x28] sm:$0xff] %v885
      %895 = vst [vmem:[%s888 + $0x30] sm:$0xff] %v886
      %896 = vst [vmem:[%s888 + $0x38] sm:$0xff] %v887
      %s897 = scalar_lea.vmem %s170, 32
      %v898 = vld [vmem:[%s897] sm:$0xff]
      %v900 = vlaneseq
      %v901 = vshrl.u32 %v900, 7
      %v902 = vsub.s32 0, %v901
      %v903 = vrot.slane %v898, %v902
      %v904 = vlaneseq
      %v905 = vshrl.u32 %v904, 7
      %v906 = vsub.s32 4, %v905
      %v907 = vrot.slane %v898, %v906
      %v910 = vlaneseq
      %v911 = vshrl.u32 %v910, 7
      %v912 = vsub.s32 0, %v911
      %v913 = vrot.slane %v903, %v912
      %v914 = vlaneseq
      %v915 = vshrl.u32 %v914, 7
      %v916 = vsub.s32 0, %v915
      %v917 = vrot.slane %v907, %v916
      %v918 = vmul.f32 %v913, %v210
      %v919 = vmul.f32 %v917, %v210
      %v920 = vmul.f32 %v913, %v215
      %v921 = vmul.f32 %v917, %v215
      %v922 = vmul.f32 %v913, %v220
      %v923 = vmul.f32 %v917, %v220
      %v924 = vmul.f32 %v913, %v225
      %v925 = vmul.f32 %v917, %v225
      %v926 = vlaneseq
      %v927 = vshrl.u32 %v926, 7
      %v928 = vsub.s32 1, %v927
      %v929 = vrot.slane %v898, %v928
      %v930 = vlaneseq
      %v931 = vshrl.u32 %v930, 7
      %v932 = vsub.s32 5, %v931
      %v933 = vrot.slane %v898, %v932
      %v936 = vlaneseq
      %v937 = vshrl.u32 %v936, 7
      %v938 = vsub.s32 1, %v937
      %v939 = vrot.slane %v929, %v938
      %v940 = vlaneseq
      %v941 = vshrl.u32 %v940, 7
      %v942 = vsub.s32 1, %v941
      %v943 = vrot.slane %v933, %v942
      %v944 = vmul.f32 %v939, %v255
      %v945 = vmul.f32 %v943, %v255
      %v946 = vmul.f32 %v939, %v259
      %v947 = vmul.f32 %v943, %v259
      %v948 = vmul.f32 %v939, %v263
      %v949 = vmul.f32 %v943, %v263
      %v950 = vmul.f32 %v939, %v267
      %v951 = vmul.f32 %v943, %v267
      %v952 = vadd.f32 %v918, %v944
      %v953 = vadd.f32 %v919, %v945
      %v954 = vadd.f32 %v920, %v946
      %v955 = vadd.f32 %v921, %v947
      %v956 = vadd.f32 %v922, %v948
      %v957 = vadd.f32 %v923, %v949
      %v958 = vadd.f32 %v924, %v950
      %v959 = vadd.f32 %v925, %v951
      %v960 = vlaneseq
      %v961 = vshrl.u32 %v960, 7
      %v962 = vsub.s32 2, %v961
      %v963 = vrot.slane %v898, %v962
      %v964 = vlaneseq
      %v965 = vshrl.u32 %v964, 7
      %v966 = vsub.s32 6, %v965
      %v967 = vrot.slane %v898, %v966
      %v970 = vlaneseq
      %v971 = vshrl.u32 %v970, 7
      %v972 = vsub.s32 2, %v971
      %v973 = vrot.slane %v963, %v972
      %v974 = vlaneseq
      %v975 = vshrl.u32 %v974, 7
      %v976 = vsub.s32 2, %v975
      %v977 = vrot.slane %v967, %v976
      %v978 = vmul.f32 %v973, %v305
      %v979 = vmul.f32 %v977, %v305
      %v980 = vmul.f32 %v973, %v309
      %v981 = vmul.f32 %v977, %v309
      %v982 = vmul.f32 %v973, %v313
      %v983 = vmul.f32 %v977, %v313
      %v984 = vmul.f32 %v973, %v317
      %v985 = vmul.f32 %v977, %v317
      %v986 = vadd.f32 %v952, %v978
      %v987 = vadd.f32 %v953, %v979
      %v988 = vadd.f32 %v954, %v980
      %v989 = vadd.f32 %v955, %v981
      %v990 = vadd.f32 %v956, %v982
      %v991 = vadd.f32 %v957, %v983
      %v992 = vadd.f32 %v958, %v984
      %v993 = vadd.f32 %v959, %v985
      %v994 = vlaneseq
      %v995 = vshrl.u32 %v994, 7
      %v996 = vsub.s32 3, %v995
      %v997 = vrot.slane %v898, %v996
      %v998 = vlaneseq
      %v999 = vshrl.u32 %v998, 7
      %v1000 = vsub.s32 7, %v999
      %v1001 = vrot.slane %v898, %v1000
      %v1004 = vlaneseq
      %v1005 = vshrl.u32 %v1004, 7
      %v1006 = vsub.s32 3, %v1005
      %v1007 = vrot.slane %v997, %v1006
      %v1008 = vlaneseq
      %v1009 = vshrl.u32 %v1008, 7
      %v1010 = vsub.s32 3, %v1009
      %v1011 = vrot.slane %v1001, %v1010
      %v1012 = vmul.f32 %v1007, %v355
      %v1013 = vmul.f32 %v1011, %v355
      %v1014 = vmul.f32 %v1007, %v359
      %v1015 = vmul.f32 %v1011, %v359
      %v1016 = vmul.f32 %v1007, %v363
      %v1017 = vmul.f32 %v1011, %v363
      %v1018 = vmul.f32 %v1007, %v367
      %v1019 = vmul.f32 %v1011, %v367
      %v1020 = vadd.f32 %v986, %v1012
      %v1021 = vadd.f32 %v987, %v1013
      %v1022 = vadd.f32 %v988, %v1014
      %v1023 = vadd.f32 %v989, %v1015
      %v1024 = vadd.f32 %v990, %v1016
      %v1025 = vadd.f32 %v991, %v1017
      %v1026 = vadd.f32 %v992, %v1018
      %v1027 = vadd.f32 %v993, %v1019
      %v1028 = vadd.f32 %v1020, %v388
      %v1029 = vadd.f32 %v1021, %v388
      %v1030 = vadd.f32 %v1022, %v393
      %v1031 = vadd.f32 %v1023, %v393
      %v1032 = vadd.f32 %v1024, %v398
      %v1033 = vadd.f32 %v1025, %v398
      %v1034 = vadd.f32 %v1026, %v403
      %v1035 = vadd.f32 %v1027, %v403
      %v1036 = vmax.f32 %v1028, 0.0
      %v1037 = vmax.f32 %v1029, 0.0
      %v1038 = vmax.f32 %v1030, 0.0
      %v1039 = vmax.f32 %v1031, 0.0
      %v1040 = vmax.f32 %v1032, 0.0
      %v1041 = vmax.f32 %v1033, 0.0
      %v1042 = vmax.f32 %v1034, 0.0
      %v1043 = vmax.f32 %v1035, 0.0
      %s1044 = scalar_lea.vmem %s177, 256
      %1045 = vst [vmem:[%s1044] sm:$0xff] %v1036
      %1046 = vst [vmem:[%s1044 + $0x8] sm:$0xff] %v1037
      %1047 = vst [vmem:[%s1044 + $0x10] sm:$0xff] %v1038
      %1048 = vst [vmem:[%s1044 + $0x18] sm:$0xff] %v1039
      %1049 = vst [vmem:[%s1044 + $0x20] sm:$0xff] %v1040
      %1050 = vst [vmem:[%s1044 + $0x28] sm:$0xff] %v1041
      %1051 = vst [vmem:[%s1044 + $0x30] sm:$0xff] %v1042
      %1052 = vst [vmem:[%s1044 + $0x38] sm:$0xff] %v1043
      %s1053 = scalar_lea.vmem %s170, 40
      %v1054 = vld [vmem:[%s1053] sm:$0xff]
      %v1056 = vlaneseq
      %v1057 = vshrl.u32 %v1056, 7
      %v1058 = vsub.s32 0, %v1057
      %v1059 = vrot.slane %v1054, %v1058
      %v1060 = vlaneseq
      %v1061 = vshrl.u32 %v1060, 7
      %v1062 = vsub.s32 4, %v1061
      %v1063 = vrot.slane %v1054, %v1062
      %v1066 = vlaneseq
      %v1067 = vshrl.u32 %v1066, 7
      %v1068 = vsub.s32 0, %v1067
      %v1069 = vrot.slane %v1059, %v1068
      %v1070 = vlaneseq
      %v1071 = vshrl.u32 %v1070, 7
      %v1072 = vsub.s32 0, %v1071
      %v1073 = vrot.slane %v1063, %v1072
      %v1074 = vmul.f32 %v1069, %v210
      %v1075 = vmul.f32 %v1073, %v210
      %v1076 = vmul.f32 %v1069, %v215
      %v1077 = vmul.f32 %v1073, %v215
      %v1078 = vmul.f32 %v1069, %v220
      %v1079 = vmul.f32 %v1073, %v220
      %v1080 = vmul.f32 %v1069, %v225
      %v1081 = vmul.f32 %v1073, %v225
      %v1082 = vlaneseq
      %v1083 = vshrl.u32 %v1082, 7
      %v1084 = vsub.s32 1, %v1083
      %v1085 = vrot.slane %v1054, %v1084
      %v1086 = vlaneseq
      %v1087 = vshrl.u32 %v1086, 7
      %v1088 = vsub.s32 5, %v1087
      %v1089 = vrot.slane %v1054, %v1088
      %v1092 = vlaneseq
      %v1093 = vshrl.u32 %v1092, 7
      %v1094 = vsub.s32 1, %v1093
      %v1095 = vrot.slane %v1085, %v1094
      %v1096 = vlaneseq
      %v1097 = vshrl.u32 %v1096, 7
      %v1098 = vsub.s32 1, %v1097
      %v1099 = vrot.slane %v1089, %v1098
      %v1100 = vmul.f32 %v1095, %v255
      %v1101 = vmul.f32 %v1099, %v255
      %v1102 = vmul.f32 %v1095, %v259
      %v1103 = vmul.f32 %v1099, %v259
      %v1104 = vmul.f32 %v1095, %v263
      %v1105 = vmul.f32 %v1099, %v263
      %v1106 = vmul.f32 %v1095, %v267
      %v1107 = vmul.f32 %v1099, %v267
      %v1108 = vadd.f32 %v1074, %v1100
      %v1109 = vadd.f32 %v1075, %v1101
      %v1110 = vadd.f32 %v1076, %v1102
      %v1111 = vadd.f32 %v1077, %v1103
      %v1112 = vadd.f32 %v1078, %v1104
      %v1113 = vadd.f32 %v1079, %v1105
      %v1114 = vadd.f32 %v1080, %v1106
      %v1115 = vadd.f32 %v1081, %v1107
      %v1116 = vlaneseq
      %v1117 = vshrl.u32 %v1116, 7
      %v1118 = vsub.s32 2, %v1117
      %v1119 = vrot.slane %v1054, %v1118
      %v1120 = vlaneseq
      %v1121 = vshrl.u32 %v1120, 7
      %v1122 = vsub.s32 6, %v1121
      %v1123 = vrot.slane %v1054, %v1122
      %v1126 = vlaneseq
      %v1127 = vshrl.u32 %v1126, 7
      %v1128 = vsub.s32 2, %v1127
      %v1129 = vrot.slane %v1119, %v1128
      %v1130 = vlaneseq
      %v1131 = vshrl.u32 %v1130, 7
      %v1132 = vsub.s32 2, %v1131
      %v1133 = vrot.slane %v1123, %v1132
      %v1134 = vmul.f32 %v1129, %v305
      %v1135 = vmul.f32 %v1133, %v305
      %v1136 = vmul.f32 %v1129, %v309
      %v1137 = vmul.f32 %v1133, %v309
      %v1138 = vmul.f32 %v1129, %v313
      %v1139 = vmul.f32 %v1133, %v313
      %v1140 = vmul.f32 %v1129, %v317
      %v1141 = vmul.f32 %v1133, %v317
      %v1142 = vadd.f32 %v1108, %v1134
      %v1143 = vadd.f32 %v1109, %v1135
      %v1144 = vadd.f32 %v1110, %v1136
      %v1145 = vadd.f32 %v1111, %v1137
      %v1146 = vadd.f32 %v1112, %v1138
      %v1147 = vadd.f32 %v1113, %v1139
      %v1148 = vadd.f32 %v1114, %v1140
      %v1149 = vadd.f32 %v1115, %v1141
      %v1150 = vlaneseq
      %v1151 = vshrl.u32 %v1150, 7
      %v1152 = vsub.s32 3, %v1151
      %v1153 = vrot.slane %v1054, %v1152
      %v1154 = vlaneseq
      %v1155 = vshrl.u32 %v1154, 7
      %v1156 = vsub.s32 7, %v1155
      %v1157 = vrot.slane %v1054, %v1156
      %v1160 = vlaneseq
      %v1161 = vshrl.u32 %v1160, 7
      %v1162 = vsub.s32 3, %v1161
      %v1163 = vrot.slane %v1153, %v1162
      %v1164 = vlaneseq
      %v1165 = vshrl.u32 %v1164, 7
      %v1166 = vsub.s32 3, %v1165
      %v1167 = vrot.slane %v1157, %v1166
      %v1168 = vmul.f32 %v1163, %v355
      %v1169 = vmul.f32 %v1167, %v355
      %v1170 = vmul.f32 %v1163, %v359
      %v1171 = vmul.f32 %v1167, %v359
      %v1172 = vmul.f32 %v1163, %v363
      %v1173 = vmul.f32 %v1167, %v363
      %v1174 = vmul.f32 %v1163, %v367
      %v1175 = vmul.f32 %v1167, %v367
      %v1176 = vadd.f32 %v1142, %v1168
      %v1177 = vadd.f32 %v1143, %v1169
      %v1178 = vadd.f32 %v1144, %v1170
      %v1179 = vadd.f32 %v1145, %v1171
      %v1180 = vadd.f32 %v1146, %v1172
      %v1181 = vadd.f32 %v1147, %v1173
      %v1182 = vadd.f32 %v1148, %v1174
      %v1183 = vadd.f32 %v1149, %v1175
      %v1184 = vadd.f32 %v1176, %v388
      %v1185 = vadd.f32 %v1177, %v388
      %v1186 = vadd.f32 %v1178, %v393
      %v1187 = vadd.f32 %v1179, %v393
      %v1188 = vadd.f32 %v1180, %v398
      %v1189 = vadd.f32 %v1181, %v398
      %v1190 = vadd.f32 %v1182, %v403
      %v1191 = vadd.f32 %v1183, %v403
      %v1192 = vmax.f32 %v1184, 0.0
      %v1193 = vmax.f32 %v1185, 0.0
      %v1194 = vmax.f32 %v1186, 0.0
      %v1195 = vmax.f32 %v1187, 0.0
      %v1196 = vmax.f32 %v1188, 0.0
      %v1197 = vmax.f32 %v1189, 0.0
      %v1198 = vmax.f32 %v1190, 0.0
      %v1199 = vmax.f32 %v1191, 0.0
      %s1200 = scalar_lea.vmem %s177, 320
      %1201 = vst [vmem:[%s1200] sm:$0xff] %v1192
      %1202 = vst [vmem:[%s1200 + $0x8] sm:$0xff] %v1193
      %1203 = vst [vmem:[%s1200 + $0x10] sm:$0xff] %v1194
      %1204 = vst [vmem:[%s1200 + $0x18] sm:$0xff] %v1195
      %1205 = vst [vmem:[%s1200 + $0x20] sm:$0xff] %v1196
      %1206 = vst [vmem:[%s1200 + $0x28] sm:$0xff] %v1197
      %1207 = vst [vmem:[%s1200 + $0x30] sm:$0xff] %v1198
      %1208 = vst [vmem:[%s1200 + $0x38] sm:$0xff] %v1199
      %s1209 = scalar_lea.vmem %s170, 48
      %v1210 = vld [vmem:[%s1209] sm:$0xff]
      %v1212 = vlaneseq
      %v1213 = vshrl.u32 %v1212, 7
      %v1214 = vsub.s32 0, %v1213
      %v1215 = vrot.slane %v1210, %v1214
      %v1216 = vlaneseq
      %v1217 = vshrl.u32 %v1216, 7
      %v1218 = vsub.s32 4, %v1217
      %v1219 = vrot.slane %v1210, %v1218
      %v1222 = vlaneseq
      %v1223 = vshrl.u32 %v1222, 7
      %v1224 = vsub.s32 0, %v1223
      %v1225 = vrot.slane %v1215, %v1224
      %v1226 = vlaneseq
      %v1227 = vshrl.u32 %v1226, 7
      %v1228 = vsub.s32 0, %v1227
      %v1229 = vrot.slane %v1219, %v1228
      %v1230 = vmul.f32 %v1225, %v210
      %v1231 = vmul.f32 %v1229, %v210
      %v1232 = vmul.f32 %v1225, %v215
      %v1233 = vmul.f32 %v1229, %v215
      %v1234 = vmul.f32 %v1225, %v220
      %v1235 = vmul.f32 %v1229, %v220
      %v1236 = vmul.f32 %v1225, %v225
      %v1237 = vmul.f32 %v1229, %v225
      %v1238 = vlaneseq
      %v1239 = vshrl.u32 %v1238, 7
      %v1240 = vsub.s32 1, %v1239
      %v1241 = vrot.slane %v1210, %v1240
      %v1242 = vlaneseq
      %v1243 = vshrl.u32 %v1242, 7
      %v1244 = vsub.s32 5, %v1243
      %v1245 = vrot.slane %v1210, %v1244
      %v1248 = vlaneseq
      %v1249 = vshrl.u32 %v1248, 7
      %v1250 = vsub.s32 1, %v1249
      %v1251 = vrot.slane %v1241, %v1250
      %v1252 = vlaneseq
      %v1253 = vshrl.u32 %v1252, 7
      %v1254 = vsub.s32 1, %v1253
      %v1255 = vrot.slane %v1245, %v1254
      %v1256 = vmul.f32 %v1251, %v255
      %v1257 = vmul.f32 %v1255, %v255
      %v1258 = vmul.f32 %v1251, %v259
      %v1259 = vmul.f32 %v1255, %v259
      %v1260 = vmul.f32 %v1251, %v263
      %v1261 = vmul.f32 %v1255, %v263
      %v1262 = vmul.f32 %v1251, %v267
      %v1263 = vmul.f32 %v1255, %v267
      %v1264 = vadd.f32 %v1230, %v1256
      %v1265 = vadd.f32 %v1231, %v1257
      %v1266 = vadd.f32 %v1232, %v1258
      %v1267 = vadd.f32 %v1233, %v1259
      %v1268 = vadd.f32 %v1234, %v1260
      %v1269 = vadd.f32 %v1235, %v1261
      %v1270 = vadd.f32 %v1236, %v1262
      %v1271 = vadd.f32 %v1237, %v1263
      %v1272 = vlaneseq
      %v1273 = vshrl.u32 %v1272, 7
      %v1274 = vsub.s32 2, %v1273
      %v1275 = vrot.slane %v1210, %v1274
      %v1276 = vlaneseq
      %v1277 = vshrl.u32 %v1276, 7
      %v1278 = vsub.s32 6, %v1277
      %v1279 = vrot.slane %v1210, %v1278
      %v1282 = vlaneseq
      %v1283 = vshrl.u32 %v1282, 7
      %v1284 = vsub.s32 2, %v1283
      %v1285 = vrot.slane %v1275, %v1284
      %v1286 = vlaneseq
      %v1287 = vshrl.u32 %v1286, 7
      %v1288 = vsub.s32 2, %v1287
      %v1289 = vrot.slane %v1279, %v1288
      %v1290 = vmul.f32 %v1285, %v305
      %v1291 = vmul.f32 %v1289, %v305
      %v1292 = vmul.f32 %v1285, %v309
      %v1293 = vmul.f32 %v1289, %v309
      %v1294 = vmul.f32 %v1285, %v313
      %v1295 = vmul.f32 %v1289, %v313
      %v1296 = vmul.f32 %v1285, %v317
      %v1297 = vmul.f32 %v1289, %v317
      %v1298 = vadd.f32 %v1264, %v1290
      %v1299 = vadd.f32 %v1265, %v1291
      %v1300 = vadd.f32 %v1266, %v1292
      %v1301 = vadd.f32 %v1267, %v1293
      %v1302 = vadd.f32 %v1268, %v1294
      %v1303 = vadd.f32 %v1269, %v1295
      %v1304 = vadd.f32 %v1270, %v1296
      %v1305 = vadd.f32 %v1271, %v1297
      %v1306 = vlaneseq
      %v1307 = vshrl.u32 %v1306, 7
      %v1308 = vsub.s32 3, %v1307
      %v1309 = vrot.slane %v1210, %v1308
      %v1310 = vlaneseq
      %v1311 = vshrl.u32 %v1310, 7
      %v1312 = vsub.s32 7, %v1311
      %v1313 = vrot.slane %v1210, %v1312
      %v1316 = vlaneseq
      %v1317 = vshrl.u32 %v1316, 7
      %v1318 = vsub.s32 3, %v1317
      %v1319 = vrot.slane %v1309, %v1318
      %v1320 = vlaneseq
      %v1321 = vshrl.u32 %v1320, 7
      %v1322 = vsub.s32 3, %v1321
      %v1323 = vrot.slane %v1313, %v1322
      %v1324 = vmul.f32 %v1319, %v355
      %v1325 = vmul.f32 %v1323, %v355
      %v1326 = vmul.f32 %v1319, %v359
      %v1327 = vmul.f32 %v1323, %v359
      %v1328 = vmul.f32 %v1319, %v363
      %v1329 = vmul.f32 %v1323, %v363
      %v1330 = vmul.f32 %v1319, %v367
      %v1331 = vmul.f32 %v1323, %v367
      %v1332 = vadd.f32 %v1298, %v1324
      %v1333 = vadd.f32 %v1299, %v1325
      %v1334 = vadd.f32 %v1300, %v1326
      %v1335 = vadd.f32 %v1301, %v1327
      %v1336 = vadd.f32 %v1302, %v1328
      %v1337 = vadd.f32 %v1303, %v1329
      %v1338 = vadd.f32 %v1304, %v1330
      %v1339 = vadd.f32 %v1305, %v1331
      %v1340 = vadd.f32 %v1332, %v388
      %v1341 = vadd.f32 %v1333, %v388
      %v1342 = vadd.f32 %v1334, %v393
      %v1343 = vadd.f32 %v1335, %v393
      %v1344 = vadd.f32 %v1336, %v398
      %v1345 = vadd.f32 %v1337, %v398
      %v1346 = vadd.f32 %v1338, %v403
      %v1347 = vadd.f32 %v1339, %v403
      %v1348 = vmax.f32 %v1340, 0.0
      %v1349 = vmax.f32 %v1341, 0.0
      %v1350 = vmax.f32 %v1342, 0.0
      %v1351 = vmax.f32 %v1343, 0.0
      %v1352 = vmax.f32 %v1344, 0.0
      %v1353 = vmax.f32 %v1345, 0.0
      %v1354 = vmax.f32 %v1346, 0.0
      %v1355 = vmax.f32 %v1347, 0.0
      %s1356 = scalar_lea.vmem %s177, 384
      %1357 = vst [vmem:[%s1356] sm:$0xff] %v1348
      %1358 = vst [vmem:[%s1356 + $0x8] sm:$0xff] %v1349
      %1359 = vst [vmem:[%s1356 + $0x10] sm:$0xff] %v1350
      %1360 = vst [vmem:[%s1356 + $0x18] sm:$0xff] %v1351
      %1361 = vst [vmem:[%s1356 + $0x20] sm:$0xff] %v1352
      %1362 = vst [vmem:[%s1356 + $0x28] sm:$0xff] %v1353
      %1363 = vst [vmem:[%s1356 + $0x30] sm:$0xff] %v1354
      %1364 = vst [vmem:[%s1356 + $0x38] sm:$0xff] %v1355
      %s1365 = scalar_lea.vmem %s170, 56
      %v1366 = vld [vmem:[%s1365] sm:$0xff]
      %v1368 = vlaneseq
      %v1369 = vshrl.u32 %v1368, 7
      %v1370 = vsub.s32 0, %v1369
      %v1371 = vrot.slane %v1366, %v1370
      %v1372 = vlaneseq
      %v1373 = vshrl.u32 %v1372, 7
      %v1374 = vsub.s32 4, %v1373
      %v1375 = vrot.slane %v1366, %v1374
      %v1378 = vlaneseq
      %v1379 = vshrl.u32 %v1378, 7
      %v1380 = vsub.s32 0, %v1379
      %v1381 = vrot.slane %v1371, %v1380
      %v1382 = vlaneseq
      %v1383 = vshrl.u32 %v1382, 7
      %v1384 = vsub.s32 0, %v1383
      %v1385 = vrot.slane %v1375, %v1384
      %v1386 = vmul.f32 %v1381, %v210
      %v1387 = vmul.f32 %v1385, %v210
      %v1388 = vmul.f32 %v1381, %v215
      %v1389 = vmul.f32 %v1385, %v215
      %v1390 = vmul.f32 %v1381, %v220
      %v1391 = vmul.f32 %v1385, %v220
      %v1392 = vmul.f32 %v1381, %v225
      %v1393 = vmul.f32 %v1385, %v225
      %v1394 = vlaneseq
      %v1395 = vshrl.u32 %v1394, 7
      %v1396 = vsub.s32 1, %v1395
      %v1397 = vrot.slane %v1366, %v1396
      %v1398 = vlaneseq
      %v1399 = vshrl.u32 %v1398, 7
      %v1400 = vsub.s32 5, %v1399
      %v1401 = vrot.slane %v1366, %v1400
      %v1404 = vlaneseq
      %v1405 = vshrl.u32 %v1404, 7
      %v1406 = vsub.s32 1, %v1405
      %v1407 = vrot.slane %v1397, %v1406
      %v1408 = vlaneseq
      %v1409 = vshrl.u32 %v1408, 7
      %v1410 = vsub.s32 1, %v1409
      %v1411 = vrot.slane %v1401, %v1410
      %v1412 = vmul.f32 %v1407, %v255
      %v1413 = vmul.f32 %v1411, %v255
      %v1414 = vmul.f32 %v1407, %v259
      %v1415 = vmul.f32 %v1411, %v259
      %v1416 = vmul.f32 %v1407, %v263
      %v1417 = vmul.f32 %v1411, %v263
      %v1418 = vmul.f32 %v1407, %v267
      %v1419 = vmul.f32 %v1411, %v267
      %v1420 = vadd.f32 %v1386, %v1412
      %v1421 = vadd.f32 %v1387, %v1413
      %v1422 = vadd.f32 %v1388, %v1414
      %v1423 = vadd.f32 %v1389, %v1415
      %v1424 = vadd.f32 %v1390, %v1416
      %v1425 = vadd.f32 %v1391, %v1417
      %v1426 = vadd.f32 %v1392, %v1418
      %v1427 = vadd.f32 %v1393, %v1419
      %v1428 = vlaneseq
      %v1429 = vshrl.u32 %v1428, 7
      %v1430 = vsub.s32 2, %v1429
      %v1431 = vrot.slane %v1366, %v1430
      %v1432 = vlaneseq
      %v1433 = vshrl.u32 %v1432, 7
      %v1434 = vsub.s32 6, %v1433
      %v1435 = vrot.slane %v1366, %v1434
      %v1438 = vlaneseq
      %v1439 = vshrl.u32 %v1438, 7
      %v1440 = vsub.s32 2, %v1439
      %v1441 = vrot.slane %v1431, %v1440
      %v1442 = vlaneseq
      %v1443 = vshrl.u32 %v1442, 7
      %v1444 = vsub.s32 2, %v1443
      %v1445 = vrot.slane %v1435, %v1444
      %v1446 = vmul.f32 %v1441, %v305
      %v1447 = vmul.f32 %v1445, %v305
      %v1448 = vmul.f32 %v1441, %v309
      %v1449 = vmul.f32 %v1445, %v309
      %v1450 = vmul.f32 %v1441, %v313
      %v1451 = vmul.f32 %v1445, %v313
      %v1452 = vmul.f32 %v1441, %v317
      %v1453 = vmul.f32 %v1445, %v317
      %v1454 = vadd.f32 %v1420, %v1446
      %v1455 = vadd.f32 %v1421, %v1447
      %v1456 = vadd.f32 %v1422, %v1448
      %v1457 = vadd.f32 %v1423, %v1449
      %v1458 = vadd.f32 %v1424, %v1450
      %v1459 = vadd.f32 %v1425, %v1451
      %v1460 = vadd.f32 %v1426, %v1452
      %v1461 = vadd.f32 %v1427, %v1453
      %v1462 = vlaneseq
      %v1463 = vshrl.u32 %v1462, 7
      %v1464 = vsub.s32 3, %v1463
      %v1465 = vrot.slane %v1366, %v1464
      %v1466 = vlaneseq
      %v1467 = vshrl.u32 %v1466, 7
      %v1468 = vsub.s32 7, %v1467
      %v1469 = vrot.slane %v1366, %v1468
      %v1472 = vlaneseq
      %v1473 = vshrl.u32 %v1472, 7
      %v1474 = vsub.s32 3, %v1473
      %v1475 = vrot.slane %v1465, %v1474
      %v1476 = vlaneseq
      %v1477 = vshrl.u32 %v1476, 7
      %v1478 = vsub.s32 3, %v1477
      %v1479 = vrot.slane %v1469, %v1478
      %v1480 = vmul.f32 %v1475, %v355
      %v1481 = vmul.f32 %v1479, %v355
      %v1482 = vmul.f32 %v1475, %v359
      %v1483 = vmul.f32 %v1479, %v359
      %v1484 = vmul.f32 %v1475, %v363
      %v1485 = vmul.f32 %v1479, %v363
      %v1486 = vmul.f32 %v1475, %v367
      %v1487 = vmul.f32 %v1479, %v367
      %v1488 = vadd.f32 %v1454, %v1480
      %v1489 = vadd.f32 %v1455, %v1481
      %v1490 = vadd.f32 %v1456, %v1482
      %v1491 = vadd.f32 %v1457, %v1483
      %v1492 = vadd.f32 %v1458, %v1484
      %v1493 = vadd.f32 %v1459, %v1485
      %v1494 = vadd.f32 %v1460, %v1486
      %v1495 = vadd.f32 %v1461, %v1487
      %v1496 = vadd.f32 %v1488, %v388
      %v1497 = vadd.f32 %v1489, %v388
      %v1498 = vadd.f32 %v1490, %v393
      %v1499 = vadd.f32 %v1491, %v393
      %v1500 = vadd.f32 %v1492, %v398
      %v1501 = vadd.f32 %v1493, %v398
      %v1502 = vadd.f32 %v1494, %v403
      %v1503 = vadd.f32 %v1495, %v403
      %v1504 = vmax.f32 %v1496, 0.0
      %v1505 = vmax.f32 %v1497, 0.0
      %v1506 = vmax.f32 %v1498, 0.0
      %v1507 = vmax.f32 %v1499, 0.0
      %v1508 = vmax.f32 %v1500, 0.0
      %v1509 = vmax.f32 %v1501, 0.0
      %v1510 = vmax.f32 %v1502, 0.0
      %v1511 = vmax.f32 %v1503, 0.0
      %s1512 = scalar_lea.vmem %s177, 448
      %1513 = vst [vmem:[%s1512] sm:$0xff] %v1504
      %1514 = vst [vmem:[%s1512 + $0x8] sm:$0xff] %v1505
      %1515 = vst [vmem:[%s1512 + $0x10] sm:$0xff] %v1506
      %1516 = vst [vmem:[%s1512 + $0x18] sm:$0xff] %v1507
      %1517 = vst [vmem:[%s1512 + $0x20] sm:$0xff] %v1508
      %1518 = vst [vmem:[%s1512 + $0x28] sm:$0xff] %v1509
      %1519 = vst [vmem:[%s1512 + $0x30] sm:$0xff] %v1510
      %1520 = vst [vmem:[%s1512 + $0x38] sm:$0xff] %v1511
      %s1521 = smul.u32 8, %s14
      %p1522 = scmp.lt.s32.totalorder %s1521, 15
      %s1523 = scalar_select %p1522, %s1521, 15
      %s1524 = smul.addr %s1523, 8
      %s1525 = smul.addr %s1524, 8
      %s1526 = scalar_lea.vmem %s3, %s1525
      // Predicated region
      $region33: #{sequence_converter_forward.1} parent=31 // pred_check
        %p1527 = pneg %p100
      $region34: #{sequence_converter_forward.1} parent=31 // pred_check_branch
        %1529 = sbr.rel (%p1527) target = $region36
      $region35: #{sequence_converter_forward.1} parent=31 // pred_region
        %s1530 = smul.u32 8, %s14
      $region36: #{sequence_converter_forward.1} parent=31 // pred_fallthru
        _
    $region32: #{sequence_converter_forward.1} parent=5 // pred_fallthru
      _
    %p1531 = scmp.le.s32.totalorder 2, %s9
    // Predicated region
    $region37: #{sequence_converter_forward.1} parent=5 // pred_check
      %p1532 = pneg %p1531
    $region38: #{sequence_converter_forward.1} parent=5 // pred_check_branch
      %1534 = sbr.rel (%p1532) target = $region40
    $region39: #{sequence_converter_forward.1} parent=5 // pred_region
      %s1535 = ssub.s32 %s9, 2
      // Predicated region
      $region41: #{sequence_converter_forward.1} parent=39 // pred_check
        %p1536 = pneg %p106
      $region42: #{sequence_converter_forward.1} parent=39 // pred_check_branch
        %1538 = sbr.rel (%p1536) target = $region44
      $region43: #{sequence_converter_forward.1} parent=39 // pred_region
        %s1539 = smul.u32 8, %s15
        %p1540 = scmp.lt.s32.totalorder %s1539, 15
        %s1541 = scalar_select %p1540, %s1539, 15
        %s1542 = smul.addr %s1541, 8
        %s1543 = smul.addr %s1542, 8
        %s1544 = scalar_lea.vmem %s3, %s1543
      $region44: #{sequence_converter_forward.1} parent=39 // pred_fallthru
        _
    $region40: #{sequence_converter_forward.1} parent=5 // pred_fallthru
      _
  $region6: #{sequence_converter_forward.1} parent=0 // loop_footer
    %s13 = sadd.s32 1, %s9
  $region7: #{sequence_converter_forward.1} parent=0 // loop_footer_branch
    %8 = sbr.rel target = $region3
  $region8: #{sequence_converter_forward.1} parent=0 // loop_exit
    _

</llo_original>
